<compile_context>
chip_gen: v7x
topology: tpu7x:2x2x1
jax: 0.10.0
libtpu: 0.0.40
codegen_flags: <defaults>
</compile_context>

<pallas_src>
import functools

import jax
import jax.numpy as jnp
from jax.experimental import pallas as pl
from jax.experimental.pallas import tpu as pltpu

LEAKY_SLOPE = 0.2
BN_EPS = 1e-5
_VMEM_LIMIT = 64 * 1024 * 1024  # <= v7x physical VMEM; ample headroom on v5e/v6e.


def _leaky_relu(x):
    return jnp.where(x > 0, x, LEAKY_SLOPE * x)


# ----------------------------------------------------------------------------
# Fused single-tile kernel (whole batch resident in VMEM, grid-less call).
# ----------------------------------------------------------------------------
def _decoder_fused_kernel(z_ref, w1_ref, b1_ref, w2_ref, gamma_ref, beta_ref,
                          w3_ref, b3_ref, out_ref):
    z = z_ref[...]
    h1 = jnp.dot(z.astype(jnp.bfloat16), w1_ref[...],
                 preferred_element_type=jnp.float32) + b1_ref[...]
    h1 = _leaky_relu(h1)
    # b2 omitted: training-mode BatchNorm subtracts the batch mean right after
    # Linear2, so the bias cancels exactly.
    h2 = jnp.dot(h1.astype(jnp.bfloat16), w2_ref[...],
                 preferred_element_type=jnp.float32)
    mean = jnp.mean(h2, axis=0, keepdims=True)
    var = jnp.mean(jnp.square(h2 - mean), axis=0, keepdims=True)
    scale = gamma_ref[...] * jax.lax.rsqrt(var + BN_EPS)      # folded BN affine
    shift = beta_ref[...] - mean * scale
    h = _leaky_relu(h2 * scale + shift)
    h3 = jnp.dot(h.astype(jnp.bfloat16), w3_ref[...],
                 preferred_element_type=jnp.float32) + b3_ref[...]
    out_ref[...] = jnp.tanh(h3)                               # tanh rides the EUP slot


def _decoder_fused(z, params):
    B, latent = z.shape
    hidden = params["w1"].shape[1]
    out_dim = params["w3"].shape[1]
    cost = pl.CostEstimate(
        flops=2 * B * (latent * hidden + hidden * hidden + hidden * out_dim)
              + 10 * B * hidden,
        transcendentals=B * out_dim + hidden,
        bytes_accessed=(z.size * 4
                        + (params["w1"].size + params["w2"].size + params["w3"].size) * 2
                        + 4 * hidden * 4 + out_dim * 4 + B * out_dim * 4),
    )
    return pl.pallas_call(
        _decoder_fused_kernel,
        out_shape=jax.ShapeDtypeStruct((B, out_dim), jnp.float32),
        compiler_params=pltpu.CompilerParams(vmem_limit_bytes=_VMEM_LIMIT),
        cost_estimate=cost,
    )(z, params["w1"], params["b1"], params["w2"],
      params["gamma"], params["beta"], params["w3"], params["b3"])


# ----------------------------------------------------------------------------
# Batch-tiled two-pass path (large B).
# ----------------------------------------------------------------------------
def _linear12_stats_kernel(z_ref, w1_ref, b1_ref, w2_ref,
                           h2_ref, sum_ref, sumsq_ref):
    z = z_ref[...]
    h1 = jnp.dot(z.astype(jnp.bfloat16), w1_ref[...],
                 preferred_element_type=jnp.float32) + b1_ref[...]
    h1 = _leaky_relu(h1)
    h2 = jnp.dot(h1.astype(jnp.bfloat16), w2_ref[...],
                 preferred_element_type=jnp.float32)   # b2 cancels under training BN
    h2_ref[...] = h2.astype(h2_ref.dtype)
    # Per-tile first/second moments in f32, so full-batch BN statistics never
    # re-read h2 from HBM.
    sum_ref[...] = jnp.sum(h2, axis=0, keepdims=True)[None]
    sumsq_ref[...] = jnp.sum(h2 * h2, axis=0, keepdims=True)[None]


def _bn_linear3_kernel(h2_ref, scale_ref, shift_ref, w3_ref, b3_ref, out_ref):
    h = h2_ref[...].astype(jnp.float32) * scale_ref[...] + shift_ref[...]
    h = _leaky_relu(h)
    h3 = jnp.dot(h.astype(jnp.bfloat16), w3_ref[...],
                 preferred_element_type=jnp.float32) + b3_ref[...]
    out_ref[...] = jnp.tanh(h3)


def _decoder_tiled(z, params, tb, h2_dtype):
    B, latent = z.shape
    hidden = params["w1"].shape[1]
    out_dim = params["w3"].shape[1]
    num_tiles = B // tb
    grid = (num_tiles,)
    parallel = pltpu.CompilerParams(dimension_semantics=("parallel",),
                                    vmem_limit_bytes=_VMEM_LIMIT)

    def row_spec(cols):                    # per-grid-step activation tiles
        return pl.BlockSpec((tb, cols), lambda i: (i, 0))

    def resident_spec(shape):              # weights/biases resident across grid steps
        return pl.BlockSpec(shape, lambda i: (0,) * len(shape))

    h2_bytes = jnp.dtype(h2_dtype).itemsize

    # ---- Pass 1: z -> pre-BN activations h2 (+ per-tile BN partial moments) ----
    cost1 = pl.CostEstimate(
        flops=2 * B * (latent * hidden + hidden * hidden) + 2 * B * hidden,
        transcendentals=0,
        bytes_accessed=(z.size * 4 + params["w1"].size * 2 + params["w2"].size * 2
                        + hidden * 4 + B * hidden * h2_bytes
                        + 2 * num_tiles * hidden * 4),
    )
    h2, sums, sumsqs = pl.pallas_call(
        _linear12_stats_kernel,
        out_shape=(jax.ShapeDtypeStruct((B, hidden), h2_dtype),
                   jax.ShapeDtypeStruct((num_tiles, 1, hidden), jnp.float32),
                   jax.ShapeDtypeStruct((num_tiles, 1, hidden), jnp.float32)),
        grid=grid,
        in_specs=[row_spec(latent),
                  resident_spec((latent, hidden)), resident_spec((1, hidden)),
                  resident_spec((hidden, hidden))],
        out_specs=(row_spec(hidden),
                   pl.BlockSpec((1, 1, hidden), lambda i: (i, 0, 0)),
                   pl.BlockSpec((1, 1, hidden), lambda i: (i, 0, 0))),
        compiler_params=parallel,
        cost_estimate=cost1,
    )(z, params["w1"], params["b1"], params["w2"])

    # Full-batch BatchNorm1d statistics (training mode, biased variance) from the
    # tiny per-tile moments, folded into one per-feature scale/shift (all f32).
    mean = jnp.sum(sums, axis=0) / B                     # (1, hidden)
    ex2 = jnp.sum(sumsqs, axis=0) / B
    var = jnp.maximum(ex2 - mean * mean, 0.0)            # guard E[x^2]-mean^2 cancellation
    scale = params["gamma"] * jax.lax.rsqrt(var + BN_EPS)
    shift = params["beta"] - mean * scale
    # TODO(synk): running_mean/running_var tracking (BatchNorm1d eval mode) not implemented.

    # ---- Pass 2: folded BN -> LeakyReLU -> Linear3 -> Tanh ----
    cost2 = pl.CostEstimate(
        flops=2 * B * hidden * out_dim + 4 * B * hidden,
        transcendentals=B * out_dim,
        bytes_accessed=(B * hidden * h2_bytes + 2 * hidden * 4 + params["w3"].size * 2
                        + out_dim * 4 + B * out_dim * 4),
    )
    img_flat = pl.pallas_call(
        _bn_linear3_kernel,
        out_shape=jax.ShapeDtypeStruct((B, out_dim), jnp.float32),
        grid=grid,
        in_specs=[row_spec(hidden),
                  resident_spec((1, hidden)), resident_spec((1, hidden)),
                  resident_spec((hidden, out_dim)), resident_spec((1, out_dim))],
        out_specs=row_spec(out_dim),
        compiler_params=parallel,
        cost_estimate=cost2,
    )(h2, scale, shift, params["w3"], params["b3"])
    return img_flat


# ----------------------------------------------------------------------------
# Parameter init & dispatch wrapper.
# ----------------------------------------------------------------------------
def init_params(key, latent_dim, hidden, out_dim):
    """PyTorch-style uniform(-1/sqrt(fan_in), 1/sqrt(fan_in)) init.
    Weights stored as bf16 (MXU inputs); biases / BN params stay f32."""
    ks = jax.random.split(key, 6)

    def lin(kw, kb, fan_in, fan_out):
        bound = 1.0 / jnp.sqrt(float(fan_in))
        w = jax.random.uniform(kw, (fan_in, fan_out), jnp.float32, -bound, bound)
        b = jax.random.uniform(kb, (1, fan_out), jnp.float32, -bound, bound)
        return w.astype(jnp.bfloat16), b

    w1, b1 = lin(ks[0], ks[1], latent_dim, hidden)
    w2, b2 = lin(ks[2], ks[3], hidden, hidden)   # b2 kept only for eval-mode BN parity
    w3, b3 = lin(ks[4], ks[5], hidden, out_dim)
    gamma = jnp.ones((1, hidden), jnp.float32)   # BatchNorm1d weight
    beta = jnp.zeros((1, hidden), jnp.float32)   # BatchNorm1d bias
    return dict(w1=w1, b1=b1, w2=w2, b2=b2, gamma=gamma, beta=beta, w3=w3, b3=b3)


def _find_divisor_tile(batch, max_tile):
    """Largest multiple-of-8 divisor of `batch` <= max_tile, preferring an even
    grid (>= 2 balanced steps) so both v7x TensorCores get work."""
    best = None
    for tb in range(min(max_tile, batch) // 8 * 8, 7, -8):
        if batch % tb == 0:
            if (batch // tb) % 2 == 0:
                return tb
            if best is None:
                best = tb
    return best


def decoder_forward(z, params, img_shape, *, max_row_tile=512, h2_dtype=jnp.bfloat16):
    """Forward pass of the AAE Decoder (training-mode BatchNorm).

    * B <= max_row_tile: single fused pallas_call (no HBM intermediates).
    * Otherwise: batch-tiled two-pass path; pass 1 emits per-tile BN moments so
      h2 is written once and read once (stored as `h2_dtype`, default bf16).
    """
    B = z.shape[0]
    tb = B if B <= max_row_tile else _find_divisor_tile(B, max_row_tile)
    if tb is None or tb == B:
        # TODO(synk): for very large batches with no multiple-of-8 divisor,
        # pad + mask instead of falling back to the whole-batch fused path.
        img_flat = _decoder_fused(z, params)
    else:
        img_flat = _decoder_tiled(z, params, tb, h2_dtype)
    # img = img_flat.view(B, C, H, W)  (NCHW, metadata-only reshape as in PyTorch)
    return img_flat.reshape(B, *img_shape)


def decoder_reference(z, params):
    """Pure-JAX reference (mirrors the bf16 matmul inputs + f32 accumulation,
    keeps b2 to demonstrate its exact cancellation under training-mode BN)."""
    def mm(x, w):
        return jnp.dot(x.astype(jnp.bfloat16), w, preferred_element_type=jnp.float32)

    h1 = _leaky_relu(mm(z, params["w1"]) + params["b1"])
    h2 = mm(h1, params["w2"]) + params["b2"]
    mean = jnp.mean(h2, axis=0, keepdims=True)
    var = jnp.mean(jnp.square(h2 - mean), axis=0, keepdims=True)
    h2n = (h2 - mean) * jax.lax.rsqrt(var + BN_EPS) * params["gamma"] + params["beta"]
    h2n = _leaky_relu(h2n)
    return jnp.tanh(mm(h2n, params["w3"]) + params["b3"])


if __name__ == "__main__":
    # Small shapes consistent with the module: latent_dim=16, channels=1, img_size=16.
    B, LATENT, HIDDEN = 64, 16, 512
    CHANNELS, IMG_SIZE = 1, 16
    img_shape = (CHANNELS, IMG_SIZE, IMG_SIZE)
    out_dim = CHANNELS * IMG_SIZE * IMG_SIZE

    key = jax.random.PRNGKey(0)
    kz, kp = jax.random.split(key)
    z = jax.random.normal(kz, (B, LATENT), jnp.float32)
    params = init_params(kp, LATENT, HIDDEN, out_dim)

    ref = decoder_reference(z, params).reshape(B, *img_shape)

    # Default path: B <= max_row_tile -> single fused kernel (no h2 HBM trips).
    fwd_fused = jax.jit(functools.partial(decoder_forward, img_shape=img_shape))
    img = jax.block_until_ready(fwd_fused(z, params))
    assert img.shape == (B, CHANNELS, IMG_SIZE, IMG_SIZE), img.shape
    err_fused = float(jnp.max(jnp.abs(img - ref)))
    assert jnp.allclose(img, ref, atol=1e-2, rtol=1e-2), f"fused mismatch: {err_fused}"

    # Forced tiled path (tb=16 -> grid=(4,)) to exercise the batch-tiled kernels
    # with per-tile BN moments and the bf16 h2 intermediate.
    fwd_tiled = jax.jit(functools.partial(decoder_forward, img_shape=img_shape,
                                          max_row_tile=16))
    img_t = jax.block_until_ready(fwd_tiled(z, params))
    err_tiled = float(jnp.max(jnp.abs(img_t - ref)))
    assert jnp.allclose(img_t, ref, atol=1e-2, rtol=1e-2), f"tiled mismatch: {err_tiled}"

    print("KERNEL_OK")
</pallas_src>

<mosaic_0001>
module attributes {stable_mosaic.version = 11 : i64} {
  func.func @_decoder_fused_kernel(%arg0: memref<64x16xf32, #tpu.memory_space<vmem>>, %arg1: memref<16x512xbf16, #tpu.memory_space<vmem>>, %arg2: memref<1x512xf32, #tpu.memory_space<vmem>>, %arg3: memref<512x512xbf16, #tpu.memory_space<vmem>>, %arg4: memref<1x512xf32, #tpu.memory_space<vmem>>, %arg5: memref<1x512xf32, #tpu.memory_space<vmem>>, %arg6: memref<512x256xbf16, #tpu.memory_space<vmem>>, %arg7: memref<1x256xf32, #tpu.memory_space<vmem>>, %arg8: memref<64x256xf32, #tpu.memory_space<vmem>>) attributes {dimension_semantics = [], scalar_prefetch = 0 : i64, scratch_operands = 0 : i64, tpu.core_type = #tpu.core_type<tc>} {
    %c0 = arith.constant 0 : index
    %c0_0 = arith.constant 0 : index
    %0 = vector.load %arg0[%c0, %c0_0] : memref<64x16xf32, #tpu.memory_space<vmem>>, vector<64x16xf32>
    %1 = arith.truncf %0 : vector<64x16xf32> to vector<64x16xbf16>
    %c0_1 = arith.constant 0 : index
    %c0_2 = arith.constant 0 : index
    %2 = vector.load %arg1[%c0_1, %c0_2] : memref<16x512xbf16, #tpu.memory_space<vmem>>, vector<16x512xbf16>
    %cst = arith.constant dense<0.000000e+00> : vector<64x512xf32>
    %3 = tpu.matmul %1, %2, %cst {dimension_numbers = #tpu.dot_dimension_numbers<[1], [0], [0], [1], [0, 0, 1, 1], [], []>} : vector<64x16xbf16>, vector<16x512xbf16>, vector<64x512xf32> -> vector<64x512xf32>
    %c0_3 = arith.constant 0 : index
    %c0_4 = arith.constant 0 : index
    %4 = vector.load %arg2[%c0_3, %c0_4] : memref<1x512xf32, #tpu.memory_space<vmem>>, vector<1x512xf32>
    %5 = vector.broadcast %4 : vector<1x512xf32> to vector<64x512xf32>
    %6 = arith.addf %3, %5 : vector<64x512xf32>
    %cst_5 = arith.constant 0.000000e+00 : f32
    %7 = vector.broadcast %cst_5 : f32 to vector<64x512xf32>
    %8 = arith.cmpf ogt, %6, %7 : vector<64x512xf32>
    %cst_6 = arith.constant 2.000000e-01 : f32
    %9 = vector.broadcast %cst_6 : f32 to vector<64x512xf32>
    %10 = arith.mulf %9, %6 : vector<64x512xf32>
    %11 = arith.select %8, %6, %10 : vector<64x512xi1>, vector<64x512xf32>
    %12 = arith.truncf %11 : vector<64x512xf32> to vector<64x512xbf16>
    %c0_7 = arith.constant 0 : index
    %c0_8 = arith.constant 0 : index
    %13 = vector.load %arg3[%c0_7, %c0_8] : memref<512x512xbf16, #tpu.memory_space<vmem>>, vector<512x512xbf16>
    %cst_9 = arith.constant dense<0.000000e+00> : vector<64x512xf32>
    %14 = tpu.matmul %12, %13, %cst_9 {dimension_numbers = #tpu.dot_dimension_numbers<[1], [0], [0], [1], [0, 0, 1, 1], [], []>} : vector<64x512xbf16>, vector<512x512xbf16>, vector<64x512xf32> -> vector<64x512xf32>
    %cst_10 = arith.constant dense<0.000000e+00> : vector<512xf32>
    %15 = vector.multi_reduction <add>, %14, %cst_10 [0] : vector<64x512xf32> to vector<512xf32>
    %16 = vector.shape_cast %15 : vector<512xf32> to vector<1x512xf32>
    %cst_11 = arith.constant 6.400000e+01 : f32
    %17 = vector.broadcast %cst_11 : f32 to vector<1x512xf32>
    %18 = arith.divf %16, %17 : vector<1x512xf32>
    %19 = vector.broadcast %18 : vector<1x512xf32> to vector<64x512xf32>
    %20 = arith.subf %14, %19 : vector<64x512xf32>
    %21 = arith.mulf %20, %20 : vector<64x512xf32>
    %cst_12 = arith.constant dense<0.000000e+00> : vector<512xf32>
    %22 = vector.multi_reduction <add>, %21, %cst_12 [0] : vector<64x512xf32> to vector<512xf32>
    %23 = vector.shape_cast %22 : vector<512xf32> to vector<1x512xf32>
    %cst_13 = arith.constant 6.400000e+01 : f32
    %24 = vector.broadcast %cst_13 : f32 to vector<1x512xf32>
    %25 = arith.divf %23, %24 : vector<1x512xf32>
    %c0_14 = arith.constant 0 : index
    %c0_15 = arith.constant 0 : index
    %26 = vector.load %arg4[%c0_14, %c0_15] : memref<1x512xf32, #tpu.memory_space<vmem>>, vector<1x512xf32>
    %cst_16 = arith.constant 9.99999974E-6 : f32
    %27 = vector.broadcast %cst_16 : f32 to vector<1x512xf32>
    %28 = arith.addf %25, %27 : vector<1x512xf32>
    %29 = math.rsqrt %28 : vector<1x512xf32>
    %30 = arith.mulf %26, %29 : vector<1x512xf32>
    %c0_17 = arith.constant 0 : index
    %c0_18 = arith.constant 0 : index
    %31 = vector.load %arg5[%c0_17, %c0_18] : memref<1x512xf32, #tpu.memory_space<vmem>>, vector<1x512xf32>
    %32 = arith.mulf %18, %30 : vector<1x512xf32>
    %33 = arith.subf %31, %32 : vector<1x512xf32>
    %34 = vector.broadcast %30 : vector<1x512xf32> to vector<64x512xf32>
    %35 = arith.mulf %14, %34 : vector<64x512xf32>
    %36 = vector.broadcast %33 : vector<1x512xf32> to vector<64x512xf32>
    %37 = arith.addf %35, %36 : vector<64x512xf32>
    %cst_19 = arith.constant 0.000000e+00 : f32
    %38 = vector.broadcast %cst_19 : f32 to vector<64x512xf32>
    %39 = arith.cmpf ogt, %37, %38 : vector<64x512xf32>
    %cst_20 = arith.constant 2.000000e-01 : f32
    %40 = vector.broadcast %cst_20 : f32 to vector<64x512xf32>
    %41 = arith.mulf %40, %37 : vector<64x512xf32>
    %42 = arith.select %39, %37, %41 : vector<64x512xi1>, vector<64x512xf32>
    %43 = arith.truncf %42 : vector<64x512xf32> to vector<64x512xbf16>
    %c0_21 = arith.constant 0 : index
    %c0_22 = arith.constant 0 : index
    %44 = vector.load %arg6[%c0_21, %c0_22] : memref<512x256xbf16, #tpu.memory_space<vmem>>, vector<512x256xbf16>
    %cst_23 = arith.constant dense<0.000000e+00> : vector<64x256xf32>
    %45 = tpu.matmul %43, %44, %cst_23 {dimension_numbers = #tpu.dot_dimension_numbers<[1], [0], [0], [1], [0, 0, 1, 1], [], []>} : vector<64x512xbf16>, vector<512x256xbf16>, vector<64x256xf32> -> vector<64x256xf32>
    %c0_24 = arith.constant 0 : index
    %c0_25 = arith.constant 0 : index
    %46 = vector.load %arg7[%c0_24, %c0_25] : memref<1x256xf32, #tpu.memory_space<vmem>>, vector<1x256xf32>
    %47 = vector.broadcast %46 : vector<1x256xf32> to vector<64x256xf32>
    %48 = arith.addf %45, %47 : vector<64x256xf32>
    %49 = math.tanh %48 : vector<64x256xf32>
    %c0_26 = arith.constant 0 : index
    %c0_27 = arith.constant 0 : index
    %50 = vector.load %arg8[%c0_26, %c0_27] : memref<64x256xf32, #tpu.memory_space<vmem>>, vector<64x256xf32>
    tpu.vector_store %arg8[%c0_26, %c0_27], %49 {strides = array<i32>} : memref<64x256xf32, #tpu.memory_space<vmem>>, vector<64x256xf32>,
    return
  }
}

</mosaic_0001>

<llo_original>
// kernel: decoder_forward.1
$region0: #{decoder_forward.1}
  #allocation0 [shape = 'u32[]', space=smem, size = 0x4, offset = 0x4, fixed_abs, tag = 'smem constant byte address 0x4 - core index']
  #allocation1 [shape = 'u32[144,128]{1,0:T(1,128)}', space=vmem, size = 0x12000, scoped, tag = 'internal scratch']
  %s0 = inlined_call_operand.hbm [shape: f32[64,16], index: 0, kind: input, shape index: {}]
  %s1 = inlined_call_operand.hbm [shape: bf16[16,512], index: 1, kind: input, shape index: {}]
  %s2 = inlined_call_operand.hbm [shape: f32[1,512], index: 2, kind: input, shape index: {}]
  %s3 = inlined_call_operand.hbm [shape: bf16[512,512], index: 3, kind: input, shape index: {}]
  %s4 = inlined_call_operand.hbm [shape: f32[1,512], index: 4, kind: input, shape index: {}]
  %s5 = inlined_call_operand.hbm [shape: f32[1,512], index: 5, kind: input, shape index: {}]
  %s6 = inlined_call_operand.hbm [shape: bf16[512,256], index: 6, kind: input, shape index: {}]
  %s7 = inlined_call_operand.hbm [shape: f32[1,256], index: 7, kind: input, shape index: {}]
  %s8 = inlined_call_operand.hbm [shape: f32[64,256], index: 8, kind: output, shape index: {}]
  %s9 = sld [smem:[#allocation0]]
  $region74: #{decoder_forward.1} parent=0
    _
  %s11 = ssub.s32 1, %s9
  %s12 = scalar_select 0, %s11, %s9
  $region1: #{decoder_forward.1} parent=0
    #allocation2 [shape = 'u8[32768]{0}', space=vmem, size = 0x8000, scoped, tag = 'input window, operand 0, single buffered']
    #allocation3 [shape = 's32[1]{0}', space=sflag, size = 0x4, scoped, tag = 'scoped memory for decoder_forward.1']
    #allocation4 [shape = 's32[1]{0}', space=sflag, size = 0x4, scoped, tag = 'scoped memory for decoder_forward.1']
    #allocation5 [shape = 'u8[16384]{0}', space=vmem, size = 0x4000, scoped, tag = 'input window, operand 1, single buffered']
    #allocation6 [shape = 's32[1]{0}', space=sflag, size = 0x4, scoped, tag = 'scoped memory for decoder_forward.1']
    #allocation7 [shape = 'u8[2048]{0}', space=vmem, size = 0x800, scoped, tag = 'input window, operand 2, single buffered']
    #allocation8 [shape = 'u8[524288]{0}', space=vmem, size = 0x80000, scoped, tag = 'input window, operand 3, single buffered']
    #allocation9 [shape = 's32[1]{0}', space=sflag, size = 0x4, scoped, tag = 'scoped memory for decoder_forward.1']
    #allocation10 [shape = 'u8[2048]{0}', space=vmem, size = 0x800, scoped, tag = 'input window, operand 4, single buffered']
    #allocation11 [shape = 'u8[2048]{0}', space=vmem, size = 0x800, scoped, tag = 'input window, operand 5, single buffered']
    #allocation12 [shape = 's32[1]{0}', space=sflag, size = 0x4, scoped, tag = 'scoped memory for decoder_forward.1']
    #allocation13 [shape = 'u8[262144]{0}', space=vmem, size = 0x40000, scoped, tag = 'input window, operand 6, single buffered']
    #allocation14 [shape = 'u8[1024]{0}', space=vmem, size = 0x400, scoped, tag = 'input window, operand 7, single buffered']
    #allocation15 [shape = 's32[1]{0}', space=sflag, size = 0x4, scoped, tag = 'scoped memory for decoder_forward.1']
    #allocation16 [shape = 'u8[65536]{0}', space=vmem, size = 0x10000, scoped, tag = 'output window, operand 0, single buffered']
    %13 = vsyncpa [#allocation3], 0
    %14 = vsyncpa [#allocation6], 0
    %15 = vsyncpa [#allocation9], 0
    %16 = vsyncpa [#allocation12], 0
    %17 = vsyncpa [#allocation15], 0
    %18 = vsyncpa [#allocation4], 0
    // Predicated region
    $region2: #{decoder_forward.1} parent=1 // pred_check
      _
    $region3: #{decoder_forward.1} parent=1 // pred_check_branch
      %20 = sbr.rel (0) target = $region5
    $region4: #{decoder_forward.1} parent=1 // pred_region
      %s22 = ssub.s32 1024, 1024
      %23 = vsyncadd [#allocation3], %s22
      %s24 = sshll.u32 [#allocation2], 4
      %s25 = int_to_ptr.vmem [resolvable:$true] %s24
      %30 = dma.hbm_to_vmem [thread:$0]  %s0, 1024, %s25, [#allocation3], 128, 128, 8
    $region5: #{decoder_forward.1} parent=1 // pred_fallthru
      _
    // Predicated region
    $region6: #{decoder_forward.1} parent=1 // pred_check
      _
    $region7: #{decoder_forward.1} parent=1 // pred_check_branch
      %32 = sbr.rel (0) target = $region9
    $region8: #{decoder_forward.1} parent=1 // pred_region
      %s34 = ssub.s32 512, 512
      %35 = vsyncadd [#allocation6], %s34
      %s36 = sshll.u32 [#allocation5], 4
      %s37 = int_to_ptr.vmem [resolvable:$true] %s36
      %42 = dma.hbm_to_vmem [thread:$0]  %s1, 512, %s37, [#allocation6], 256, 256, 16
    $region9: #{decoder_forward.1} parent=1 // pred_fallthru
      _
    // Predicated region
    $region10: #{decoder_forward.1} parent=1 // pred_check
      _
    $region11: #{decoder_forward.1} parent=1 // pred_check_branch
      %44 = sbr.rel (0) target = $region13
    $region12: #{decoder_forward.1} parent=1 // pred_region
      %s46 = ssub.s32 64, 64
      %47 = vsyncadd [#allocation6], %s46
      %s49 = sshll.u32 [#allocation7], 4
      %s50 = int_to_ptr.vmem [resolvable:$true] %s49
      %52 = dma.hbm_to_vmem [thread:$0]  %s2, 64, %s50, [#allocation6]
    $region13: #{decoder_forward.1} parent=1 // pred_fallthru
      _
    // Predicated region
    $region14: #{decoder_forward.1} parent=1 // pred_check
      _
    $region15: #{decoder_forward.1} parent=1 // pred_check_branch
      %54 = sbr.rel (0) target = $region17
    $region16: #{decoder_forward.1} parent=1 // pred_region
      %s56 = ssub.s32 16384, 16384
      %57 = vsyncadd [#allocation9], %s56
      %s58 = sshll.u32 [#allocation8], 4
      %s59 = int_to_ptr.vmem [resolvable:$true] %s58
      %64 = dma.hbm_to_vmem [thread:$0]  %s3, 16384, %s59, [#allocation9], 256, 256, 16
    $region17: #{decoder_forward.1} parent=1 // pred_fallthru
      _
    // Predicated region
    $region18: #{decoder_forward.1} parent=1 // pred_check
      _
    $region19: #{decoder_forward.1} parent=1 // pred_check_branch
      %66 = sbr.rel (0) target = $region21
    $region20: #{decoder_forward.1} parent=1 // pred_region
      %s68 = ssub.s32 64, 64
      %69 = vsyncadd [#allocation9], %s68
      %s71 = sshll.u32 [#allocation10], 4
      %s72 = int_to_ptr.vmem [resolvable:$true] %s71
      %74 = dma.hbm_to_vmem [thread:$0]  %s4, 64, %s72, [#allocation9]
    $region21: #{decoder_forward.1} parent=1 // pred_fallthru
      _
    // Predicated region
    $region22: #{decoder_forward.1} parent=1 // pred_check
      _
    $region23: #{decoder_forward.1} parent=1 // pred_check_branch
      %76 = sbr.rel (0) target = $region25
    $region24: #{decoder_forward.1} parent=1 // pred_region
      %s78 = ssub.s32 64, 64
      %79 = vsyncadd [#allocation12], %s78
      %s81 = sshll.u32 [#allocation11], 4
      %s82 = int_to_ptr.vmem [resolvable:$true] %s81
      %84 = dma.hbm_to_vmem [thread:$0]  %s5, 64, %s82, [#allocation12]
    $region25: #{decoder_forward.1} parent=1 // pred_fallthru
      _
    // Predicated region
    $region26: #{decoder_forward.1} parent=1 // pred_check
      _
    $region27: #{decoder_forward.1} parent=1 // pred_check_branch
      %86 = sbr.rel (0) target = $region29
    $region28: #{decoder_forward.1} parent=1 // pred_region
      %s88 = ssub.s32 8192, 8192
      %89 = vsyncadd [#allocation12], %s88
      %s90 = sshll.u32 [#allocation13], 4
      %s91 = int_to_ptr.vmem [resolvable:$true] %s90
      %96 = dma.hbm_to_vmem [thread:$0]  %s6, 8192, %s91, [#allocation12], 128, 128, 8
    $region29: #{decoder_forward.1} parent=1 // pred_fallthru
      _
    // Predicated region
    $region30: #{decoder_forward.1} parent=1 // pred_check
      _
    $region31: #{decoder_forward.1} parent=1 // pred_check_branch
      %98 = sbr.rel (0) target = $region33
    $region32: #{decoder_forward.1} parent=1 // pred_region
      %s100 = ssub.s32 32, 32
      %101 = vsyncadd [#allocation15], %s100
      %s103 = sshll.u32 [#allocation14], 4
      %s104 = int_to_ptr.vmem [resolvable:$true] %s103
      %106 = dma.hbm_to_vmem [thread:$0]  %s7, 32, %s104, [#allocation15]
    $region33: #{decoder_forward.1} parent=1 // pred_fallthru
      _
    // Predicated region
    $region34: #{decoder_forward.1} parent=1 // pred_check
      _
    $region35: #{decoder_forward.1} parent=1 // pred_check_branch
      %108 = sbr.rel (0) target = $region37
    $region36: #{decoder_forward.1} parent=1 // pred_region
      %109 = dma.done [#allocation3], 1024
    $region37: #{decoder_forward.1} parent=1 // pred_fallthru
      _
    // Predicated region
    $region38: #{decoder_forward.1} parent=1 // pred_check
      _
    $region39: #{decoder_forward.1} parent=1 // pred_check_branch
      %111 = sbr.rel (0) target = $region41
    $region40: #{decoder_forward.1} parent=1 // pred_region
      %112 = dma.done [#allocation6], 512
    $region41: #{decoder_forward.1} parent=1 // pred_fallthru
      _
    // Predicated region
    $region42: #{decoder_forward.1} parent=1 // pred_check
      _
    $region43: #{decoder_forward.1} parent=1 // pred_check_branch
      %114 = sbr.rel (0) target = $region45
    $region44: #{decoder_forward.1} parent=1 // pred_region
      %115 = dma.done [#allocation6], 64
    $region45: #{decoder_forward.1} parent=1 // pred_fallthru
      _
    // Predicated region
    $region46: #{decoder_forward.1} parent=1 // pred_check
      _
    $region47: #{decoder_forward.1} parent=1 // pred_check_branch
      %117 = sbr.rel (0) target = $region49
    $region48: #{decoder_forward.1} parent=1 // pred_region
      %118 = dma.done [#allocation9], 16384
    $region49: #{decoder_forward.1} parent=1 // pred_fallthru
      _
    // Predicated region
    $region50: #{decoder_forward.1} parent=1 // pred_check
      _
    $region51: #{decoder_forward.1} parent=1 // pred_check_branch
      %120 = sbr.rel (0) target = $region53
    $region52: #{decoder_forward.1} parent=1 // pred_region
      %121 = dma.done [#allocation9], 64
    $region53: #{decoder_forward.1} parent=1 // pred_fallthru
      _
    // Predicated region
    $region54: #{decoder_forward.1} parent=1 // pred_check
      _
    $region55: #{decoder_forward.1} parent=1 // pred_check_branch
      %123 = sbr.rel (0) target = $region57
    $region56: #{decoder_forward.1} parent=1 // pred_region
      %124 = dma.done [#allocation12], 64
    $region57: #{decoder_forward.1} parent=1 // pred_fallthru
      _
    // Predicated region
    $region58: #{decoder_forward.1} parent=1 // pred_check
      _
    $region59: #{decoder_forward.1} parent=1 // pred_check_branch
      %126 = sbr.rel (0) target = $region61
    $region60: #{decoder_forward.1} parent=1 // pred_region
      %127 = dma.done [#allocation12], 8192
    $region61: #{decoder_forward.1} parent=1 // pred_fallthru
      _
    // Predicated region
    $region62: #{decoder_forward.1} parent=1 // pred_check
      _
    $region63: #{decoder_forward.1} parent=1 // pred_check_branch
      %129 = sbr.rel (0) target = $region65
    $region64: #{decoder_forward.1} parent=1 // pred_region
      %130 = dma.done [#allocation15], 32
    $region65: #{decoder_forward.1} parent=1 // pred_fallthru
      _
    %v132 = vld [vmem:[#allocation2] sm:$0xff]
    %v133 = vld [vmem:[#allocation2 + $0x8] sm:$0xff]
    %v134 = vld [vmem:[#allocation2 + $0x10] sm:$0xff]
    %v135 = vld [vmem:[#allocation2 + $0x18] sm:$0xff]
    %v136 = vld [vmem:[#allocation2 + $0x20] sm:$0xff]
    %v137 = vld [vmem:[#allocation2 + $0x28] sm:$0xff]
    %v138 = vld [vmem:[#allocation2 + $0x30] sm:$0xff]
    %v139 = vld [vmem:[#allocation2 + $0x38] sm:$0xff]
    %v140 = vpack.c.bf16 %v133, %v132
    %v141 = vpack.c.bf16 %v135, %v134
    %v142 = vpack.c.bf16 %v137, %v136
    %v143 = vpack.c.bf16 %v139, %v138
    %v144 = vld [vmem:[#allocation5] sm:$0xff]
    %v145 = vld [vmem:[#allocation5 + $0x8] sm:$0xff]
    %v146 = vld [vmem:[#allocation5 + $0x10] sm:$0xff]
    %v147 = vld [vmem:[#allocation5 + $0x18] sm:$0xff]
    %v148 = vld [vmem:[#allocation7] sm:$0xf]
    %v150 = vlaneseq
    %v151 = vshrl.u32 %v150, 7
    %v152 = vsub.s32 0, %v151
    %v153 = vrot.slane %v148, %v152
    %v154 = vlaneseq
    %v155 = vshrl.u32 %v154, 7
    %v156 = vsub.s32 1, %v155
    %v157 = vrot.slane %v148, %v156
    %v158 = vlaneseq
    %v159 = vshrl.u32 %v158, 7
    %v160 = vsub.s32 2, %v159
    %v161 = vrot.slane %v148, %v160
    %v162 = vlaneseq
    %v163 = vshrl.u32 %v162, 7
    %v164 = vsub.s32 3, %v163
    %v165 = vrot.slane %v148, %v164
    %v174 = vunpack.c.l.b16 %v144
    %v175 = vunpack.c.h.b16 %v144
    %v176 = vunpack.c.l.b16 %v145
    %v177 = vunpack.c.h.b16 %v145
    %v178 = vunpack.c.l.b16 %v146
    %v179 = vunpack.c.h.b16 %v146
    %v180 = vunpack.c.l.b16 %v147
    %v181 = vunpack.c.h.b16 %v147
    %v182 = vpack.c.b16 %v178, %v174
    %v183 = vpack.c.b16 %v179, %v175
    %v184 = vpack.c.b16 %v180, %v176
    %v185 = vpack.c.b16 %v181, %v177
    %vm190 = vcmask 130048
    %v192 = vsel %vm190, %v140, 0
    %v195 = vsel %vm190, %v141, 0
    %v198 = vsel %vm190, %v142, 0
    %v201 = vsel %vm190, %v143, 0
    %203 = vmatprep.subr.bf16.mxu0 %v183
    %204 = vmatpush1.bf16.msra.mxu0 %v182
    %205 = vmatprep.subr.bf16.mxu0 0
    %206 = vmatpush1.bf16.msra.mxu0 0
    %207 = vmatprep.subr.bf16.mxu0 0
    %208 = vmatpush1.bf16.msra.mxu0 0
    %209 = vmatprep.subr.bf16.mxu0 0
    %210 = vmatpush1.bf16.msra.mxu0 0
    %211 = vmatprep.subr.bf16.mxu0 0
    %212 = vmatpush1.bf16.msra.mxu0 0
    %213 = vmatprep.subr.bf16.mxu0 0
    %214 = vmatpush1.bf16.msra.mxu0 0
    %215 = vmatprep.subr.bf16.mxu0 0
    %216 = vmatpush1.bf16.msra.mxu0 0
    %217 = vmatprep.subr.bf16.mxu0 0
    %218 = vmatpush1.bf16.msra.mxu0 0
    %219 = vmatprep.subr.bf16.mxu0 0
    %220 = vmatpush1.bf16.msra.mxu0 0
    %221 = vmatprep.subr.bf16.mxu0 0
    %222 = vmatpush1.bf16.msra.mxu0 0
    %223 = vmatprep.subr.bf16.mxu0 0
    %224 = vmatpush1.bf16.msra.mxu0 0
    %225 = vmatprep.subr.bf16.mxu0 0
    %226 = vmatpush1.bf16.msra.mxu0 0
    %227 = vmatprep.subr.bf16.mxu0 0
    %228 = vmatpush1.bf16.msra.mxu0 0
    %229 = vmatprep.subr.bf16.mxu0 0
    %230 = vmatpush1.bf16.msra.mxu0 0
    %231 = vmatprep.subr.bf16.mxu0 0
    %232 = vmatpush1.bf16.msra.mxu0 0
    %233 = vmatprep.subr.bf16.mxu0 0
    %234 = vmatpush1.bf16.msra.mxu0 0
    %235 = vmatprep.mubr.bf16.mxu0 0
    %236 = vmatmul.mubr.bf16.gmra.mrb[0].mxu0 %v192
    %v237 = vpop.f32.mrb[0].mxu0
    %v238 = vadd.f32 %v153, %v237
    %v239 = vpop.f32.mrb[0].mxu0
    %v240 = vadd.f32 %v157, %v239
    %v241 = vpop.f32.mrb[0].mxu0
    %v242 = vadd.f32 %v153, %v241
    %v243 = vpop.f32.mrb[0].mxu0
    %v244 = vadd.f32 %v157, %v243
    %245 = vmatprep.mubr.bf16.mxu0 0
    %246 = vmatmul.mubr.bf16.gmra.mrb[0].mxu0 %v195
    %v247 = vpop.f32.mrb[0].mxu0
    %v248 = vadd.f32 %v153, %v247
    %v249 = vpop.f32.mrb[0].mxu0
    %v250 = vadd.f32 %v157, %v249
    %v251 = vpop.f32.mrb[0].mxu0
    %v252 = vadd.f32 %v153, %v251
    %v253 = vpop.f32.mrb[0].mxu0
    %v254 = vadd.f32 %v157, %v253
    %255 = vmatprep.mubr.bf16.mxu0 0
    %256 = vmatmul.mubr.bf16.gmra.mrb[0].mxu0 %v198
    %v257 = vpop.f32.mrb[0].mxu0
    %v258 = vadd.f32 %v153, %v257
    %v259 = vpop.f32.mrb[0].mxu0
    %v260 = vadd.f32 %v157, %v259
    %v261 = vpop.f32.mrb[0].mxu0
    %v262 = vadd.f32 %v153, %v261
    %v263 = vpop.f32.mrb[0].mxu0
    %v264 = vadd.f32 %v157, %v263
    %265 = vmatprep.mubr.bf16.mxu0 0
    %266 = vmatmul.mubr.bf16.gmra.mrb[0].mxu0 %v201
    %v267 = vpop.f32.mrb[0].mxu0
    %v268 = vadd.f32 %v153, %v267
    %v269 = vpop.f32.mrb[0].mxu0
    %v270 = vadd.f32 %v157, %v269
    %v271 = vpop.f32.mrb[0].mxu0
    %v272 = vadd.f32 %v153, %v271
    %v273 = vpop.f32.mrb[0].mxu0
    %v274 = vadd.f32 %v157, %v273
    %275 = vdwg.mxu0
    %276 = vmatprep.subr.bf16.mxu0 %v185
    %277 = vmatpush1.bf16.msra.mxu0 %v184
    %278 = vmatprep.subr.bf16.mxu0 0
    %279 = vmatpush1.bf16.msra.mxu0 0
    %280 = vmatprep.subr.bf16.mxu0 0
    %281 = vmatpush1.bf16.msra.mxu0 0
    %282 = vmatprep.subr.bf16.mxu0 0
    %283 = vmatpush1.bf16.msra.mxu0 0
    %284 = vmatprep.subr.bf16.mxu0 0
    %285 = vmatpush1.bf16.msra.mxu0 0
    %286 = vmatprep.subr.bf16.mxu0 0
    %287 = vmatpush1.bf16.msra.mxu0 0
    %288 = vmatprep.subr.bf16.mxu0 0
    %289 = vmatpush1.bf16.msra.mxu0 0
    %290 = vmatprep.subr.bf16.mxu0 0
    %291 = vmatpush1.bf16.msra.mxu0 0
    %292 = vmatprep.subr.bf16.mxu0 0
    %293 = vmatpush1.bf16.msra.mxu0 0
    %294 = vmatprep.subr.bf16.mxu0 0
    %295 = vmatpush1.bf16.msra.mxu0 0
    %296 = vmatprep.subr.bf16.mxu0 0
    %297 = vmatpush1.bf16.msra.mxu0 0
    %298 = vmatprep.subr.bf16.mxu0 0
    %299 = vmatpush1.bf16.msra.mxu0 0
    %300 = vmatprep.subr.bf16.mxu0 0
    %301 = vmatpush1.bf16.msra.mxu0 0
    %302 = vmatprep.subr.bf16.mxu0 0
    %303 = vmatpush1.bf16.msra.mxu0 0
    %304 = vmatprep.subr.bf16.mxu0 0
    %305 = vmatpush1.bf16.msra.mxu0 0
    %306 = vmatprep.subr.bf16.mxu0 0
    %307 = vmatpush1.bf16.msra.mxu0 0
    %308 = vmatprep.mubr.bf16.mxu0 0
    %309 = vmatmul.mubr.bf16.gmra.mrb[0].mxu0 %v192
    %v310 = vpop.f32.mrb[0].mxu0
    %v311 = vadd.f32 %v161, %v310
    %v312 = vpop.f32.mrb[0].mxu0
    %v313 = vadd.f32 %v165, %v312
    %v314 = vpop.f32.mrb[0].mxu0
    %v315 = vadd.f32 %v161, %v314
    %v316 = vpop.f32.mrb[0].mxu0
    %v317 = vadd.f32 %v165, %v316
    %318 = vmatprep.mubr.bf16.mxu0 0
    %319 = vmatmul.mubr.bf16.gmra.mrb[0].mxu0 %v195
    %v320 = vpop.f32.mrb[0].mxu0
    %v321 = vadd.f32 %v161, %v320
    %v322 = vpop.f32.mrb[0].mxu0
    %v323 = vadd.f32 %v165, %v322
    %v324 = vpop.f32.mrb[0].mxu0
    %v325 = vadd.f32 %v161, %v324
    %v326 = vpop.f32.mrb[0].mxu0
    %v327 = vadd.f32 %v165, %v326
    %328 = vmatprep.mubr.bf16.mxu0 0
    %329 = vmatmul.mubr.bf16.gmra.mrb[0].mxu0 %v198
    %v330 = vpop.f32.mrb[0].mxu0
    %v331 = vadd.f32 %v161, %v330
    %v332 = vpop.f32.mrb[0].mxu0
    %v333 = vadd.f32 %v165, %v332
    %v334 = vpop.f32.mrb[0].mxu0
    %v335 = vadd.f32 %v161, %v334
    %v336 = vpop.f32.mrb[0].mxu0
    %v337 = vadd.f32 %v165, %v336
    %338 = vmatprep.mubr.bf16.mxu0 0
    %339 = vmatmul.mubr.bf16.gmra.mrb[0].mxu0 %v201
    %v340 = vpop.f32.mrb[0].mxu0
    %v341 = vadd.f32 %v161, %v340
    %v342 = vpop.f32.mrb[0].mxu0
    %v343 = vadd.f32 %v165, %v342
    %v344 = vpop.f32.mrb[0].mxu0
    %v345 = vadd.f32 %v161, %v344
    %v346 = vpop.f32.mrb[0].mxu0
    %v347 = vadd.f32 %v165, %v346
    %348 = vdwg.mxu0
    %vm349 = vcmp.gt.f32.partialorder %v238, 0.0
    %vm350 = vcmp.gt.f32.partialorder %v240, 0.0
    %vm351 = vcmp.gt.f32.partialorder %v311, 0.0
    %vm352 = vcmp.gt.f32.partialorder %v313, 0.0
    %vm353 = vcmp.gt.f32.partialorder %v242, 0.0
    %vm354 = vcmp.gt.f32.partialorder %v244, 0.0
    %vm355 = vcmp.gt.f32.partialorder %v315, 0.0
    %vm356 = vcmp.gt.f32.partialorder %v317, 0.0
    %vm357 = vcmp.gt.f32.partialorder %v248, 0.0
    %vm358 = vcmp.gt.f32.partialorder %v250, 0.0
    %vm359 = vcmp.gt.f32.partialorder %v321, 0.0
    %vm360 = vcmp.gt.f32.partialorder %v323, 0.0
    %vm361 = vcmp.gt.f32.partialorder %v252, 0.0
    %vm362 = vcmp.gt.f32.partialorder %v254, 0.0
    %vm363 = vcmp.gt.f32.partialorder %v325, 0.0
    %vm364 = vcmp.gt.f32.partialorder %v327, 0.0
    %vm365 = vcmp.gt.f32.partialorder %v258, 0.0
    %vm366 = vcmp.gt.f32.partialorder %v260, 0.0
    %vm367 = vcmp.gt.f32.partialorder %v331, 0.0
    %vm368 = vcmp.gt.f32.partialorder %v333, 0.0
    %vm369 = vcmp.gt.f32.partialorder %v262, 0.0
    %vm370 = vcmp.gt.f32.partialorder %v264, 0.0
    %vm371 = vcmp.gt.f32.partialorder %v335, 0.0
    %vm372 = vcmp.gt.f32.partialorder %v337, 0.0
    %vm373 = vcmp.gt.f32.partialorder %v268, 0.0
    %vm374 = vcmp.gt.f32.partialorder %v270, 0.0
    %vm375 = vcmp.gt.f32.partialorder %v341, 0.0
    %vm376 = vcmp.gt.f32.partialorder %v343, 0.0
    %vm377 = vcmp.gt.f32.partialorder %v272, 0.0
    %vm378 = vcmp.gt.f32.partialorder %v274, 0.0
    %vm379 = vcmp.gt.f32.partialorder %v345, 0.0
    %vm380 = vcmp.gt.f32.partialorder %v347, 0.0
    %v381 = vmul.f32 %v238, 0.2
    %v382 = vmul.f32 %v240, 0.2
    %v383 = vmul.f32 %v311, 0.2
    %v384 = vmul.f32 %v313, 0.2
    %v385 = vmul.f32 %v242, 0.2
    %v386 = vmul.f32 %v244, 0.2
    %v387 = vmul.f32 %v315, 0.2
    %v388 = vmul.f32 %v317, 0.2
    %v389 = vmul.f32 %v248, 0.2
    %v390 = vmul.f32 %v250, 0.2
    %v391 = vmul.f32 %v321, 0.2
    %v392 = vmul.f32 %v323, 0.2
    %v393 = vmul.f32 %v252, 0.2
    %v394 = vmul.f32 %v254, 0.2
    %v395 = vmul.f32 %v325, 0.2
    %v396 = vmul.f32 %v327, 0.2
    %v397 = vmul.f32 %v258, 0.2
    %v398 = vmul.f32 %v260, 0.2
    %v399 = vmul.f32 %v331, 0.2
    %v400 = vmul.f32 %v333, 0.2
    %v401 = vmul.f32 %v262, 0.2
    %v402 = vmul.f32 %v264, 0.2
    %v403 = vmul.f32 %v335, 0.2
    %v404 = vmul.f32 %v337, 0.2
    %v405 = vmul.f32 %v268, 0.2
    %v406 = vmul.f32 %v270, 0.2
    %v407 = vmul.f32 %v341, 0.2
    %v408 = vmul.f32 %v343, 0.2
    %v409 = vmul.f32 %v272, 0.2
    %v410 = vmul.f32 %v274, 0.2
    %v411 = vmul.f32 %v345, 0.2
    %v412 = vmul.f32 %v347, 0.2
    %v413 = vsel %vm349, %v238, %v381
    %v414 = vsel %vm350, %v240, %v382
    %v415 = vsel %vm351, %v311, %v383
    %v416 = vsel %vm352, %v313, %v384
    %v417 = vsel %vm353, %v242, %v385
    %v418 = vsel %vm354, %v244, %v386
    %v419 = vsel %vm355, %v315, %v387
    %v420 = vsel %vm356, %v317, %v388
    %v421 = vsel %vm357, %v248, %v389
    %v422 = vsel %vm358, %v250, %v390
    %v423 = vsel %vm359, %v321, %v391
    %v424 = vsel %vm360, %v323, %v392
    %v425 = vsel %vm361, %v252, %v393
    %v426 = vsel %vm362, %v254, %v394
    %v427 = vsel %vm363, %v325, %v395
    %v428 = vsel %vm364, %v327, %v396
    %v429 = vsel %vm365, %v258, %v397
    %v430 = vsel %vm366, %v260, %v398
    %v431 = vsel %vm367, %v331, %v399
    %v432 = vsel %vm368, %v333, %v400
    %v433 = vsel %vm369, %v262, %v401
    %v434 = vsel %vm370, %v264, %v402
    %v435 = vsel %vm371, %v335, %v403
    %v436 = vsel %vm372, %v337, %v404
    %v437 = vsel %vm373, %v268, %v405
    %v438 = vsel %vm374, %v270, %v406
    %v439 = vsel %vm375, %v341, %v407
    %v440 = vsel %vm376, %v343, %v408
    %v441 = vsel %vm377, %v272, %v409
    %v442 = vsel %vm378, %v274, %v410
    %v443 = vsel %vm379, %v345, %v411
    %v444 = vsel %vm380, %v347, %v412
    %v445 = vpack.c.bf16 %v417, %v413
    %v446 = vpack.c.bf16 %v418, %v414
    %v447 = vpack.c.bf16 %v419, %v415
    %v448 = vpack.c.bf16 %v420, %v416
    %v449 = vpack.c.bf16 %v425, %v421
    %v450 = vpack.c.bf16 %v426, %v422
    %v451 = vpack.c.bf16 %v427, %v423
    %v452 = vpack.c.bf16 %v428, %v424
    %v453 = vpack.c.bf16 %v433, %v429
    %v454 = vpack.c.bf16 %v434, %v430
    %v455 = vpack.c.bf16 %v435, %v431
    %v456 = vpack.c.bf16 %v436, %v432
    %v457 = vpack.c.bf16 %v441, %v437
    %v458 = vpack.c.bf16 %v442, %v438
    %v459 = vpack.c.bf16 %v443, %v439
    %v460 = vpack.c.bf16 %v444, %v440
    %v461 = vld [vmem:[#allocation8] sm:$0xff]
    %v462 = vld [vmem:[#allocation8 + $0x8] sm:$0xff]
    %v463 = vld [vmem:[#allocation8 + $0x10] sm:$0xff]
    %v464 = vld [vmem:[#allocation8 + $0x18] sm:$0xff]
    %v465 = vld [vmem:[#allocation8 + $0x20] sm:$0xff]
    %v466 = vld [vmem:[#allocation8 + $0x28] sm:$0xff]
    %v467 = vld [vmem:[#allocation8 + $0x30] sm:$0xff]
    %v468 = vld [vmem:[#allocation8 + $0x38] sm:$0xff]
    %v469 = vld [vmem:[#allocation8 + $0x40] sm:$0xff]
    %v470 = vld [vmem:[#allocation8 + $0x48] sm:$0xff]
    %v471 = vld [vmem:[#allocation8 + $0x50] sm:$0xff]
    %v472 = vld [vmem:[#allocation8 + $0x58] sm:$0xff]
    %v473 = vld [vmem:[#allocation8 + $0x60] sm:$0xff]
    %v474 = vld [vmem:[#allocation8 + $0x68] sm:$0xff]
    %v475 = vld [vmem:[#allocation8 + $0x70] sm:$0xff]
    %v476 = vld [vmem:[#allocation8 + $0x78] sm:$0xff]
    %v477 = vld [vmem:[#allocation8 + $0x80] sm:$0xff]
    %v478 = vld [vmem:[#allocation8 + $0x88] sm:$0xff]
    %v479 = vld [vmem:[#allocation8 + $0x90] sm:$0xff]
    %v480 = vld [vmem:[#allocation8 + $0x98] sm:$0xff]
    %v481 = vld [vmem:[#allocation8 + $0xa0] sm:$0xff]
    %v482 = vld [vmem:[#allocation8 + $0xa8] sm:$0xff]
    %v483 = vld [vmem:[#allocation8 + $0xb0] sm:$0xff]
    %v484 = vld [vmem:[#allocation8 + $0xb8] sm:$0xff]
    %v485 = vld [vmem:[#allocation8 + $0xc0] sm:$0xff]
    %v486 = vld [vmem:[#allocation8 + $0xc8] sm:$0xff]
    %v487 = vld [vmem:[#allocation8 + $0xd0] sm:$0xff]
    %v488 = vld [vmem:[#allocation8 + $0xd8] sm:$0xff]
    %v489 = vld [vmem:[#allocation8 + $0xe0] sm:$0xff]
    %v490 = vld [vmem:[#allocation8 + $0xe8] sm:$0xff]
    %v491 = vld [vmem:[#allocation8 + $0xf0] sm:$0xff]
    %v492 = vld [vmem:[#allocation8 + $0xf8] sm:$0xff]
    %v493 = vld [vmem:[#allocation8 + $0x100] sm:$0xff]
    %v494 = vld [vmem:[#allocation8 + $0x108] sm:$0xff]
    %v495 = vld [vmem:[#allocation8 + $0x110] sm:$0xff]
    %v496 = vld [vmem:[#allocation8 + $0x118] sm:$0xff]
    %v497 = vld [vmem:[#allocation8 + $0x120] sm:$0xff]
    %v498 = vld [vmem:[#allocation8 + $0x128] sm:$0xff]
    %v499 = vld [vmem:[#allocation8 + $0x130] sm:$0xff]
    %v500 = vld [vmem:[#allocation8 + $0x138] sm:$0xff]
    %v501 = vld [vmem:[#allocation8 + $0x140] sm:$0xff]
    %v502 = vld [vmem:[#allocation8 + $0x148] sm:$0xff]
    %v503 = vld [vmem:[#allocation8 + $0x150] sm:$0xff]
    %v504 = vld [vmem:[#allocation8 + $0x158] sm:$0xff]
    %v505 = vld [vmem:[#allocation8 + $0x160] sm:$0xff]
    %v506 = vld [vmem:[#allocation8 + $0x168] sm:$0xff]
    %v507 = vld [vmem:[#allocation8 + $0x170] sm:$0xff]
    %v508 = vld [vmem:[#allocation8 + $0x178] sm:$0xff]
    %v509 = vld [vmem:[#allocation8 + $0x180] sm:$0xff]
    %v510 = vld [vmem:[#allocation8 + $0x188] sm:$0xff]
    %v511 = vld [vmem:[#allocation8 + $0x190] sm:$0xff]
    %v512 = vld [vmem:[#allocation8 + $0x198] sm:$0xff]
    %v513 = vld [vmem:[#allocation8 + $0x1a0] sm:$0xff]
    %v514 = vld [vmem:[#allocation8 + $0x1a8] sm:$0xff]
    %v515 = vld [vmem:[#allocation8 + $0x1b0] sm:$0xff]
    %v516 = vld [vmem:[#allocation8 + $0x1b8] sm:$0xff]
    %v517 = vld [vmem:[#allocation8 + $0x1c0] sm:$0xff]
    %v518 = vld [vmem:[#allocation8 + $0x1c8] sm:$0xff]
    %v519 = vld [vmem:[#allocation8 + $0x1d0] sm:$0xff]
    %v520 = vld [vmem:[#allocation8 + $0x1d8] sm:$0xff]
    %v521 = vld [vmem:[#allocation8 + $0x1e0] sm:$0xff]
    %v522 = vld [vmem:[#allocation8 + $0x1e8] sm:$0xff]
    %v523 = vld [vmem:[#allocation8 + $0x1f0] sm:$0xff]
    %v524 = vld [vmem:[#allocation8 + $0x1f8] sm:$0xff]
    %v525 = vld [vmem:[#allocation8 + $0x200] sm:$0xff]
    %v526 = vld [vmem:[#allocation8 + $0x208] sm:$0xff]
    %v527 = vld [vmem:[#allocation8 + $0x210] sm:$0xff]
    %v528 = vld [vmem:[#allocation8 + $0x218] sm:$0xff]
    %v529 = vld [vmem:[#allocation8 + $0x220] sm:$0xff]
    %v530 = vld [vmem:[#allocation8 + $0x228] sm:$0xff]
    %v531 = vld [vmem:[#allocation8 + $0x230] sm:$0xff]
    %v532 = vld [vmem:[#allocation8 + $0x238] sm:$0xff]
    %v533 = vld [vmem:[#allocation8 + $0x240] sm:$0xff]
    %v534 = vld [vmem:[#allocation8 + $0x248] sm:$0xff]
    %v535 = vld [vmem:[#allocation8 + $0x250] sm:$0xff]
    %v536 = vld [vmem:[#allocation8 + $0x258] sm:$0xff]
    %v537 = vld [vmem:[#allocation8 + $0x260] sm:$0xff]
    %v538 = vld [vmem:[#allocation8 + $0x268] sm:$0xff]
    %v539 = vld [vmem:[#allocation8 + $0x270] sm:$0xff]
    %v540 = vld [vmem:[#allocation8 + $0x278] sm:$0xff]
    %v541 = vld [vmem:[#allocation8 + $0x280] sm:$0xff]
    %v542 = vld [vmem:[#allocation8 + $0x288] sm:$0xff]
    %v543 = vld [vmem:[#allocation8 + $0x290] sm:$0xff]
    %v544 = vld [vmem:[#allocation8 + $0x298] sm:$0xff]
    %v545 = vld [vmem:[#allocation8 + $0x2a0] sm:$0xff]
    %v546 = vld [vmem:[#allocation8 + $0x2a8] sm:$0xff]
    %v547 = vld [vmem:[#allocation8 + $0x2b0] sm:$0xff]
    %v548 = vld [vmem:[#allocation8 + $0x2b8] sm:$0xff]
    %v549 = vld [vmem:[#allocation8 + $0x2c0] sm:$0xff]
    %v550 = vld [vmem:[#allocation8 + $0x2c8] sm:$0xff]
    %v551 = vld [vmem:[#allocation8 + $0x2d0] sm:$0xff]
    %v552 = vld [vmem:[#allocation8 + $0x2d8] sm:$0xff]
    %v553 = vld [vmem:[#allocation8 + $0x2e0] sm:$0xff]
    %v554 = vld [vmem:[#allocation8 + $0x2e8] sm:$0xff]
    %v555 = vld [vmem:[#allocation8 + $0x2f0] sm:$0xff]
    %v556 = vld [vmem:[#allocation8 + $0x2f8] sm:$0xff]
    %v557 = vld [vmem:[#allocation8 + $0x300] sm:$0xff]
    %v558 = vld [vmem:[#allocation8 + $0x308] sm:$0xff]
    %v559 = vld [vmem:[#allocation8 + $0x310] sm:$0xff]
    %v560 = vld [vmem:[#allocation8 + $0x318] sm:$0xff]
    %v561 = vld [vmem:[#allocation8 + $0x320] sm:$0xff]
    %v562 = vld [vmem:[#allocation8 + $0x328] sm:$0xff]
    %v563 = vld [vmem:[#allocation8 + $0x330] sm:$0xff]
    %v564 = vld [vmem:[#allocation8 + $0x338] sm:$0xff]
    %v565 = vld [vmem:[#allocation8 + $0x340] sm:$0xff]
    %v566 = vld [vmem:[#allocation8 + $0x348] sm:$0xff]
    %v567 = vld [vmem:[#allocation8 + $0x350] sm:$0xff]
    %v568 = vld [vmem:[#allocation8 + $0x358] sm:$0xff]
    %v569 = vld [vmem:[#allocation8 + $0x360] sm:$0xff]
    %v570 = vld [vmem:[#allocation8 + $0x368] sm:$0xff]
    %v571 = vld [vmem:[#allocation8 + $0x370] sm:$0xff]
    %v572 = vld [vmem:[#allocation8 + $0x378] sm:$0xff]
    %v573 = vld [vmem:[#allocation8 + $0x380] sm:$0xff]
    %v574 = vld [vmem:[#allocation8 + $0x388] sm:$0xff]
    %v575 = vld [vmem:[#allocation8 + $0x390] sm:$0xff]
    %v576 = vld [vmem:[#allocation8 + $0x398] sm:$0xff]
    %v577 = vld [vmem:[#allocation8 + $0x3a0] sm:$0xff]
    %v578 = vld [vmem:[#allocation8 + $0x3a8] sm:$0xff]
    %v579 = vld [vmem:[#allocation8 + $0x3b0] sm:$0xff]
    %v580 = vld [vmem:[#allocation8 + $0x3b8] sm:$0xff]
    %v581 = vld [vmem:[#allocation8 + $0x3c0] sm:$0xff]
    %v582 = vld [vmem:[#allocation8 + $0x3c8] sm:$0xff]
    %v583 = vld [vmem:[#allocation8 + $0x3d0] sm:$0xff]
    %v584 = vld [vmem:[#allocation8 + $0x3d8] sm:$0xff]
    %v585 = vld [vmem:[#allocation8 + $0x3e0] sm:$0xff]
    %v586 = vld [vmem:[#allocation8 + $0x3e8] sm:$0xff]
    %v587 = vld [vmem:[#allocation8 + $0x3f0] sm:$0xff]
    %v588 = vld [vmem:[#allocation8 + $0x3f8] sm:$0xff]
    %v717 = vunpack.c.l.b16 %v461
    %v718 = vunpack.c.h.b16 %v461
    %v719 = vunpack.c.l.b16 %v462
    %v720 = vunpack.c.h.b16 %v462
    %v721 = vunpack.c.l.b16 %v463
    %v722 = vunpack.c.h.b16 %v463
    %v723 = vunpack.c.l.b16 %v464
    %v724 = vunpack.c.h.b16 %v464
    %v725 = vunpack.c.l.b16 %v465
    %v726 = vunpack.c.h.b16 %v465
    %v727 = vunpack.c.l.b16 %v466
    %v728 = vunpack.c.h.b16 %v466
    %v729 = vunpack.c.l.b16 %v467
    %v730 = vunpack.c.h.b16 %v467
    %v731 = vunpack.c.l.b16 %v468
    %v732 = vunpack.c.h.b16 %v468
    %v733 = vunpack.c.l.b16 %v469
    %v734 = vunpack.c.h.b16 %v469
    %v735 = vunpack.c.l.b16 %v470
    %v736 = vunpack.c.h.b16 %v470
    %v737 = vunpack.c.l.b16 %v471
    %v738 = vunpack.c.h.b16 %v471
    %v739 = vunpack.c.l.b16 %v472
    %v740 = vunpack.c.h.b16 %v472
    %v741 = vunpack.c.l.b16 %v473
    %v742 = vunpack.c.h.b16 %v473
    %v743 = vunpack.c.l.b16 %v474
    %v744 = vunpack.c.h.b16 %v474
    %v745 = vunpack.c.l.b16 %v475
    %v746 = vunpack.c.h.b16 %v475
    %v747 = vunpack.c.l.b16 %v476
    %v748 = vunpack.c.h.b16 %v476
    %v749 = vunpack.c.l.b16 %v477
    %v750 = vunpack.c.h.b16 %v477
    %v751 = vunpack.c.l.b16 %v478
    %v752 = vunpack.c.h.b16 %v478
    %v753 = vunpack.c.l.b16 %v479
    %v754 = vunpack.c.h.b16 %v479
    %v755 = vunpack.c.l.b16 %v480
    %v756 = vunpack.c.h.b16 %v480
    %v757 = vunpack.c.l.b16 %v481
    %v758 = vunpack.c.h.b16 %v481
    %v759 = vunpack.c.l.b16 %v482
    %v760 = vunpack.c.h.b16 %v482
    %v761 = vunpack.c.l.b16 %v483
    %v762 = vunpack.c.h.b16 %v483
    %v763 = vunpack.c.l.b16 %v484
    %v764 = vunpack.c.h.b16 %v484
    %v765 = vunpack.c.l.b16 %v485
    %v766 = vunpack.c.h.b16 %v485
    %v767 = vunpack.c.l.b16 %v486
    %v768 = vunpack.c.h.b16 %v486
    %v769 = vunpack.c.l.b16 %v487
    %v770 = vunpack.c.h.b16 %v487
    %v771 = vunpack.c.l.b16 %v488
    %v772 = vunpack.c.h.b16 %v488
    %v773 = vunpack.c.l.b16 %v489
    %v774 = vunpack.c.h.b16 %v489
    %v775 = vunpack.c.l.b16 %v490
    %v776 = vunpack.c.h.b16 %v490
    %v777 = vunpack.c.l.b16 %v491
    %v778 = vunpack.c.h.b16 %v491
    %v779 = vunpack.c.l.b16 %v492
    %v780 = vunpack.c.h.b16 %v492
    %v781 = vunpack.c.l.b16 %v493
    %v782 = vunpack.c.h.b16 %v493
    %v783 = vunpack.c.l.b16 %v494
    %v784 = vunpack.c.h.b16 %v494
    %v785 = vunpack.c.l.b16 %v495
    %v786 = vunpack.c.h.b16 %v495
    %v787 = vunpack.c.l.b16 %v496
    %v788 = vunpack.c.h.b16 %v496
    %v789 = vunpack.c.l.b16 %v497
    %v790 = vunpack.c.h.b16 %v497
    %v791 = vunpack.c.l.b16 %v498
    %v792 = vunpack.c.h.b16 %v498
    %v793 = vunpack.c.l.b16 %v499
    %v794 = vunpack.c.h.b16 %v499
    %v795 = vunpack.c.l.b16 %v500
    %v796 = vunpack.c.h.b16 %v500
    %v797 = vunpack.c.l.b16 %v501
    %v798 = vunpack.c.h.b16 %v501
    %v799 = vunpack.c.l.b16 %v502
    %v800 = vunpack.c.h.b16 %v502
    %v801 = vunpack.c.l.b16 %v503
    %v802 = vunpack.c.h.b16 %v503
    %v803 = vunpack.c.l.b16 %v504
    %v804 = vunpack.c.h.b16 %v504
    %v805 = vunpack.c.l.b16 %v505
    %v806 = vunpack.c.h.b16 %v505
    %v807 = vunpack.c.l.b16 %v506
    %v808 = vunpack.c.h.b16 %v506
    %v809 = vunpack.c.l.b16 %v507
    %v810 = vunpack.c.h.b16 %v507
    %v811 = vunpack.c.l.b16 %v508
    %v812 = vunpack.c.h.b16 %v508
    %v813 = vunpack.c.l.b16 %v509
    %v814 = vunpack.c.h.b16 %v509
    %v815 = vunpack.c.l.b16 %v510
    %v816 = vunpack.c.h.b16 %v510
    %v817 = vunpack.c.l.b16 %v511
    %v818 = vunpack.c.h.b16 %v511
    %v819 = vunpack.c.l.b16 %v512
    %v820 = vunpack.c.h.b16 %v512
    %v821 = vunpack.c.l.b16 %v513
    %v822 = vunpack.c.h.b16 %v513
    %v823 = vunpack.c.l.b16 %v514
    %v824 = vunpack.c.h.b16 %v514
    %v825 = vunpack.c.l.b16 %v515
    %v826 = vunpack.c.h.b16 %v515
    %v827 = vunpack.c.l.b16 %v516
    %v828 = vunpack.c.h.b16 %v516
    %v829 = vunpack.c.l.b16 %v517
    %v830 = vunpack.c.h.b16 %v517
    %v831 = vunpack.c.l.b16 %v518
    %v832 = vunpack.c.h.b16 %v518
    %v833 = vunpack.c.l.b16 %v519
    %v834 = vunpack.c.h.b16 %v519
    %v835 = vunpack.c.l.b16 %v520
    %v836 = vunpack.c.h.b16 %v520
    %v837 = vunpack.c.l.b16 %v521
    %v838 = vunpack.c.h.b16 %v521
    %v839 = vunpack.c.l.b16 %v522
    %v840 = vunpack.c.h.b16 %v522
    %v841 = vunpack.c.l.b16 %v523
    %v842 = vunpack.c.h.b16 %v523
    %v843 = vunpack.c.l.b16 %v524
    %v844 = vunpack.c.h.b16 %v524
    %v845 = vunpack.c.l.b16 %v525
    %v846 = vunpack.c.h.b16 %v525
    %v847 = vunpack.c.l.b16 %v526
    %v848 = vunpack.c.h.b16 %v526
    %v849 = vunpack.c.l.b16 %v527
    %v850 = vunpack.c.h.b16 %v527
    %v851 = vunpack.c.l.b16 %v528
    %v852 = vunpack.c.h.b16 %v528
    %v853 = vunpack.c.l.b16 %v529
    %v854 = vunpack.c.h.b16 %v529
    %v855 = vunpack.c.l.b16 %v530
    %v856 = vunpack.c.h.b16 %v530
    %v857 = vunpack.c.l.b16 %v531
    %v858 = vunpack.c.h.b16 %v531
    %v859 = vunpack.c.l.b16 %v532
    %v860 = vunpack.c.h.b16 %v532
    %v861 = vunpack.c.l.b16 %v533
    %v862 = vunpack.c.h.b16 %v533
    %v863 = vunpack.c.l.b16 %v534
    %v864 = vunpack.c.h.b16 %v534
    %v865 = vunpack.c.l.b16 %v535
    %v866 = vunpack.c.h.b16 %v535
    %v867 = vunpack.c.l.b16 %v536
    %v868 = vunpack.c.h.b16 %v536
    %v869 = vunpack.c.l.b16 %v537
    %v870 = vunpack.c.h.b16 %v537
    %v871 = vunpack.c.l.b16 %v538
    %v872 = vunpack.c.h.b16 %v538
    %v873 = vunpack.c.l.b16 %v539
    %v874 = vunpack.c.h.b16 %v539
    %v875 = vunpack.c.l.b16 %v540
    %v876 = vunpack.c.h.b16 %v540
    %v877 = vunpack.c.l.b16 %v541
    %v878 = vunpack.c.h.b16 %v541
    %v879 = vunpack.c.l.b16 %v542
    %v880 = vunpack.c.h.b16 %v542
    %v881 = vunpack.c.l.b16 %v543
    %v882 = vunpack.c.h.b16 %v543
    %v883 = vunpack.c.l.b16 %v544
    %v884 = vunpack.c.h.b16 %v544
    %v885 = vunpack.c.l.b16 %v545
    %v886 = vunpack.c.h.b16 %v545
    %v887 = vunpack.c.l.b16 %v546
    %v888 = vunpack.c.h.b16 %v546
    %v889 = vunpack.c.l.b16 %v547
    %v890 = vunpack.c.h.b16 %v547
    %v891 = vunpack.c.l.b16 %v548
    %v892 = vunpack.c.h.b16 %v548
    %v893 = vunpack.c.l.b16 %v549
    %v894 = vunpack.c.h.b16 %v549
    %v895 = vunpack.c.l.b16 %v550
    %v896 = vunpack.c.h.b16 %v550
    %v897 = vunpack.c.l.b16 %v551
    %v898 = vunpack.c.h.b16 %v551
    %v899 = vunpack.c.l.b16 %v552
    %v900 = vunpack.c.h.b16 %v552
    %v901 = vunpack.c.l.b16 %v553
    %v902 = vunpack.c.h.b16 %v553
    %v903 = vunpack.c.l.b16 %v554
    %v904 = vunpack.c.h.b16 %v554
    %v905 = vunpack.c.l.b16 %v555
    %v906 = vunpack.c.h.b16 %v555
    %v907 = vunpack.c.l.b16 %v556
    %v908 = vunpack.c.h.b16 %v556
    %v909 = vunpack.c.l.b16 %v557
    %v910 = vunpack.c.h.b16 %v557
    %v911 = vunpack.c.l.b16 %v558
    %v912 = vunpack.c.h.b16 %v558
    %v913 = vunpack.c.l.b16 %v559
    %v914 = vunpack.c.h.b16 %v559
    %v915 = vunpack.c.l.b16 %v560
    %v916 = vunpack.c.h.b16 %v560
    %v917 = vunpack.c.l.b16 %v561
    %v918 = vunpack.c.h.b16 %v561
    %v919 = vunpack.c.l.b16 %v562
    %v920 = vunpack.c.h.b16 %v562
    %v921 = vunpack.c.l.b16 %v563
    %v922 = vunpack.c.h.b16 %v563
    %v923 = vunpack.c.l.b16 %v564
    %v924 = vunpack.c.h.b16 %v564
    %v925 = vunpack.c.l.b16 %v565
    %v926 = vunpack.c.h.b16 %v565
    %v927 = vunpack.c.l.b16 %v566
    %v928 = vunpack.c.h.b16 %v566
    %v929 = vunpack.c.l.b16 %v567
    %v930 = vunpack.c.h.b16 %v567
    %v931 = vunpack.c.l.b16 %v568
    %v932 = vunpack.c.h.b16 %v568
    %v933 = vunpack.c.l.b16 %v569
    %v934 = vunpack.c.h.b16 %v569
    %v935 = vunpack.c.l.b16 %v570
    %v936 = vunpack.c.h.b16 %v570
    %v937 = vunpack.c.l.b16 %v571
    %v938 = vunpack.c.h.b16 %v571
    %v939 = vunpack.c.l.b16 %v572
    %v940 = vunpack.c.h.b16 %v572
    %v941 = vunpack.c.l.b16 %v573
    %v942 = vunpack.c.h.b16 %v573
    %v943 = vunpack.c.l.b16 %v574
    %v944 = vunpack.c.h.b16 %v574
    %v945 = vunpack.c.l.b16 %v575
    %v946 = vunpack.c.h.b16 %v575
    %v947 = vunpack.c.l.b16 %v576
    %v948 = vunpack.c.h.b16 %v576
    %v949 = vunpack.c.l.b16 %v577
    %v950 = vunpack.c.h.b16 %v577
    %v951 = vunpack.c.l.b16 %v578
    %v952 = vunpack.c.h.b16 %v578
    %v953 = vunpack.c.l.b16 %v579
    %v954 = vunpack.c.h.b16 %v579
    %v955 = vunpack.c.l.b16 %v580
    %v956 = vunpack.c.h.b16 %v580
    %v957 = vunpack.c.l.b16 %v581
    %v958 = vunpack.c.h.b16 %v581
    %v959 = vunpack.c.l.b16 %v582
    %v960 = vunpack.c.h.b16 %v582
    %v961 = vunpack.c.l.b16 %v583
    %v962 = vunpack.c.h.b16 %v583
    %v963 = vunpack.c.l.b16 %v584
    %v964 = vunpack.c.h.b16 %v584
    %v965 = vunpack.c.l.b16 %v585
    %v966 = vunpack.c.h.b16 %v585
    %v967 = vunpack.c.l.b16 %v586
    %v968 = vunpack.c.h.b16 %v586
    %v969 = vunpack.c.l.b16 %v587
    %v970 = vunpack.c.h.b16 %v587
    %v971 = vunpack.c.l.b16 %v588
    %v972 = vunpack.c.h.b16 %v588
    %v973 = vpack.c.b16 %v721, %v717
    %v974 = vpack.c.b16 %v722, %v718
    %v975 = vpack.c.b16 %v723, %v719
    %v976 = vpack.c.b16 %v724, %v720
    %v977 = vpack.c.b16 %v729, %v725
    %v978 = vpack.c.b16 %v730, %v726
    %v979 = vpack.c.b16 %v731, %v727
    %v980 = vpack.c.b16 %v732, %v728
    %v981 = vpack.c.b16 %v737, %v733
    %v982 = vpack.c.b16 %v738, %v734
    %v983 = vpack.c.b16 %v739, %v735
    %v984 = vpack.c.b16 %v740, %v736
    %v985 = vpack.c.b16 %v745, %v741
    %v986 = vpack.c.b16 %v746, %v742
    %v987 = vpack.c.b16 %v747, %v743
    %v988 = vpack.c.b16 %v748, %v744
    %v989 = vpack.c.b16 %v753, %v749
    %v990 = vpack.c.b16 %v754, %v750
    %v991 = vpack.c.b16 %v755, %v751
    %v992 = vpack.c.b16 %v756, %v752
    %v993 = vpack.c.b16 %v761, %v757
    %v994 = vpack.c.b16 %v762, %v758
    %v995 = vpack.c.b16 %v763, %v759
    %v996 = vpack.c.b16 %v764, %v760
    %v997 = vpack.c.b16 %v769, %v765
    %v998 = vpack.c.b16 %v770, %v766
    %v999 = vpack.c.b16 %v771, %v767
    %v1000 = vpack.c.b16 %v772, %v768
    %v1001 = vpack.c.b16 %v777, %v773
    %v1002 = vpack.c.b16 %v778, %v774
    %v1003 = vpack.c.b16 %v779, %v775
    %v1004 = vpack.c.b16 %v780, %v776
    %v1005 = vpack.c.b16 %v785, %v781
    %v1006 = vpack.c.b16 %v786, %v782
    %v1007 = vpack.c.b16 %v787, %v783
    %v1008 = vpack.c.b16 %v788, %v784
    %v1009 = vpack.c.b16 %v793, %v789
    %v1010 = vpack.c.b16 %v794, %v790
    %v1011 = vpack.c.b16 %v795, %v791
    %v1012 = vpack.c.b16 %v796, %v792
    %v1013 = vpack.c.b16 %v801, %v797
    %v1014 = vpack.c.b16 %v802, %v798
    %v1015 = vpack.c.b16 %v803, %v799
    %v1016 = vpack.c.b16 %v804, %v800
    %v1017 = vpack.c.b16 %v809, %v805
    %v1018 = vpack.c.b16 %v810, %v806
    %v1019 = vpack.c.b16 %v811, %v807
    %v1020 = vpack.c.b16 %v812, %v808
    %v1021 = vpack.c.b16 %v817, %v813
    %v1022 = vpack.c.b16 %v818, %v814
    %v1023 = vpack.c.b16 %v819, %v815
    %v1024 = vpack.c.b16 %v820, %v816
    %v1025 = vpack.c.b16 %v825, %v821
    %v1026 = vpack.c.b16 %v826, %v822
    %v1027 = vpack.c.b16 %v827, %v823
    %v1028 = vpack.c.b16 %v828, %v824
    %v1029 = vpack.c.b16 %v833, %v829
    %v1030 = vpack.c.b16 %v834, %v830
    %v1031 = vpack.c.b16 %v835, %v831
    %v1032 = vpack.c.b16 %v836, %v832
    %v1033 = vpack.c.b16 %v841, %v837
    %v1034 = vpack.c.b16 %v842, %v838
    %v1035 = vpack.c.b16 %v843, %v839
    %v1036 = vpack.c.b16 %v844, %v840
    %v1037 = vpack.c.b16 %v849, %v845
    %v1038 = vpack.c.b16 %v850, %v846
    %v1039 = vpack.c.b16 %v851, %v847
    %v1040 = vpack.c.b16 %v852, %v848
    %v1041 = vpack.c.b16 %v857, %v853
    %v1042 = vpack.c.b16 %v858, %v854
    %v1043 = vpack.c.b16 %v859, %v855
    %v1044 = vpack.c.b16 %v860, %v856
    %v1045 = vpack.c.b16 %v865, %v861
    %v1046 = vpack.c.b16 %v866, %v862
    %v1047 = vpack.c.b16 %v867, %v863
    %v1048 = vpack.c.b16 %v868, %v864
    %v1049 = vpack.c.b16 %v873, %v869
    %v1050 = vpack.c.b16 %v874, %v870
    %v1051 = vpack.c.b16 %v875, %v871
    %v1052 = vpack.c.b16 %v876, %v872
    %v1053 = vpack.c.b16 %v881, %v877
    %v1054 = vpack.c.b16 %v882, %v878
    %v1055 = vpack.c.b16 %v883, %v879
    %v1056 = vpack.c.b16 %v884, %v880
    %v1057 = vpack.c.b16 %v889, %v885
    %v1058 = vpack.c.b16 %v890, %v886
    %v1059 = vpack.c.b16 %v891, %v887
    %v1060 = vpack.c.b16 %v892, %v888
    %v1061 = vpack.c.b16 %v897, %v893
    %v1062 = vpack.c.b16 %v898, %v894
    %v1063 = vpack.c.b16 %v899, %v895
    %v1064 = vpack.c.b16 %v900, %v896
    %v1065 = vpack.c.b16 %v905, %v901
    %v1066 = vpack.c.b16 %v906, %v902
    %v1067 = vpack.c.b16 %v907, %v903
    %v1068 = vpack.c.b16 %v908, %v904
    %v1069 = vpack.c.b16 %v913, %v909
    %v1070 = vpack.c.b16 %v914, %v910
    %v1071 = vpack.c.b16 %v915, %v911
    %v1072 = vpack.c.b16 %v916, %v912
    %v1073 = vpack.c.b16 %v921, %v917
    %v1074 = vpack.c.b16 %v922, %v918
    %v1075 = vpack.c.b16 %v923, %v919
    %v1076 = vpack.c.b16 %v924, %v920
    %v1077 = vpack.c.b16 %v929, %v925
    %v1078 = vpack.c.b16 %v930, %v926
    %v1079 = vpack.c.b16 %v931, %v927
    %v1080 = vpack.c.b16 %v932, %v928
    %v1081 = vpack.c.b16 %v937, %v933
    %v1082 = vpack.c.b16 %v938, %v934
    %v1083 = vpack.c.b16 %v939, %v935
    %v1084 = vpack.c.b16 %v940, %v936
    %v1085 = vpack.c.b16 %v945, %v941
    %v1086 = vpack.c.b16 %v946, %v942
    %v1087 = vpack.c.b16 %v947, %v943
    %v1088 = vpack.c.b16 %v948, %v944
    %v1089 = vpack.c.b16 %v953, %v949
    %v1090 = vpack.c.b16 %v954, %v950
    %v1091 = vpack.c.b16 %v955, %v951
    %v1092 = vpack.c.b16 %v956, %v952
    %v1093 = vpack.c.b16 %v961, %v957
    %v1094 = vpack.c.b16 %v962, %v958
    %v1095 = vpack.c.b16 %v963, %v959
    %v1096 = vpack.c.b16 %v964, %v960
    %v1097 = vpack.c.b16 %v969, %v965
    %v1098 = vpack.c.b16 %v970, %v966
    %v1099 = vpack.c.b16 %v971, %v967
    %v1100 = vpack.c.b16 %v972, %v968
    %1229 = vmatprep.subr.bf16.mxu0 %v974
    %1230 = vmatpush1.bf16.msra.mxu0 %v973
    %1231 = vmatprep.subr.bf16.mxu0 %v978
    %1232 = vmatpush1.bf16.msra.mxu0 %v977
    %1233 = vmatprep.subr.bf16.mxu0 %v982
    %1234 = vmatpush1.bf16.msra.mxu0 %v981
    %1235 = vmatprep.subr.bf16.mxu0 %v986
    %1236 = vmatpush1.bf16.msra.mxu0 %v985
    %1237 = vmatprep.subr.bf16.mxu0 %v990
    %1238 = vmatpush1.bf16.msra.mxu0 %v989
    %1239 = vmatprep.subr.bf16.mxu0 %v994
    %1240 = vmatpush1.bf16.msra.mxu0 %v993
    %1241 = vmatprep.subr.bf16.mxu0 %v998
    %1242 = vmatpush1.bf16.msra.mxu0 %v997
    %1243 = vmatprep.subr.bf16.mxu0 %v1002
    %1244 = vmatpush1.bf16.msra.mxu0 %v1001
    %1245 = vmatprep.subr.bf16.mxu0 %v1006
    %1246 = vmatpush1.bf16.msra.mxu0 %v1005
    %1247 = vmatprep.subr.bf16.mxu0 %v1010
    %1248 = vmatpush1.bf16.msra.mxu0 %v1009
    %1249 = vmatprep.subr.bf16.mxu0 %v1014
    %1250 = vmatpush1.bf16.msra.mxu0 %v1013
    %1251 = vmatprep.subr.bf16.mxu0 %v1018
    %1252 = vmatpush1.bf16.msra.mxu0 %v1017
    %1253 = vmatprep.subr.bf16.mxu0 %v1022
    %1254 = vmatpush1.bf16.msra.mxu0 %v1021
    %1255 = vmatprep.subr.bf16.mxu0 %v1026
    %1256 = vmatpush1.bf16.msra.mxu0 %v1025
    %1257 = vmatprep.subr.bf16.mxu0 %v1030
    %1258 = vmatpush1.bf16.msra.mxu0 %v1029
    %1259 = vmatprep.subr.bf16.mxu0 %v1034
    %1260 = vmatpush1.bf16.msra.mxu0 %v1033
    %1261 = vmatprep.mubr.bf16.mxu0 %v446
    %1262 = vmatmul.mubr.bf16.gmra.mrb[0].mxu0 %v445
    %v1263 = vpop.f32.mrb[0].mxu0
    %v1264 = vadd.f32 0.0, %v1263
    %v1265 = vpop.f32.mrb[0].mxu0
    %v1266 = vadd.f32 0.0, %v1265
    %v1267 = vpop.f32.mrb[0].mxu0
    %v1268 = vadd.f32 0.0, %v1267
    %v1269 = vpop.f32.mrb[0].mxu0
    %v1270 = vadd.f32 0.0, %v1269
    %1271 = vmatprep.mubr.bf16.mxu0 %v450
    %1272 = vmatmul.mubr.bf16.gmra.mrb[0].mxu0 %v449
    %v1273 = vpop.f32.mrb[0].mxu0
    %v1274 = vadd.f32 0.0, %v1273
    %v1275 = vpop.f32.mrb[0].mxu0
    %v1276 = vadd.f32 0.0, %v1275
    %v1277 = vpop.f32.mrb[0].mxu0
    %v1278 = vadd.f32 0.0, %v1277
    %v1279 = vpop.f32.mrb[0].mxu0
    %v1280 = vadd.f32 0.0, %v1279
    %1281 = vmatprep.mubr.bf16.mxu0 %v454
    %1282 = vmatmul.mubr.bf16.gmra.mrb[0].mxu0 %v453
    %v1283 = vpop.f32.mrb[0].mxu0
    %v1284 = vadd.f32 0.0, %v1283
    %v1285 = vpop.f32.mrb[0].mxu0
    %v1286 = vadd.f32 0.0, %v1285
    %v1287 = vpop.f32.mrb[0].mxu0
    %v1288 = vadd.f32 0.0, %v1287
    %v1289 = vpop.f32.mrb[0].mxu0
    %v1290 = vadd.f32 0.0, %v1289
    %1291 = vmatprep.mubr.bf16.mxu0 %v458
    %1292 = vmatmul.mubr.bf16.gmra.mrb[0].mxu0 %v457
    %v1293 = vpop.f32.mrb[0].mxu0
    %v1294 = vadd.f32 0.0, %v1293
    %v1295 = vpop.f32.mrb[0].mxu0
    %v1296 = vadd.f32 0.0, %v1295
    %v1297 = vpop.f32.mrb[0].mxu0
    %v1298 = vadd.f32 0.0, %v1297
    %v1299 = vpop.f32.mrb[0].mxu0
    %v1300 = vadd.f32 0.0, %v1299
    %1301 = vdwg.mxu0
    %1302 = vmatprep.subr.bf16.mxu0 %v1038
    %1303 = vmatpush1.bf16.msra.mxu0 %v1037
    %1304 = vmatprep.subr.bf16.mxu0 %v1042
    %1305 = vmatpush1.bf16.msra.mxu0 %v1041
    %1306 = vmatprep.subr.bf16.mxu0 %v1046
    %1307 = vmatpush1.bf16.msra.mxu0 %v1045
    %1308 = vmatprep.subr.bf16.mxu0 %v1050
    %1309 = vmatpush1.bf16.msra.mxu0 %v1049
    %1310 = vmatprep.subr.bf16.mxu0 %v1054
    %1311 = vmatpush1.bf16.msra.mxu0 %v1053
    %1312 = vmatprep.subr.bf16.mxu0 %v1058
    %1313 = vmatpush1.bf16.msra.mxu0 %v1057
    %1314 = vmatprep.subr.bf16.mxu0 %v1062
    %1315 = vmatpush1.bf16.msra.mxu0 %v1061
    %1316 = vmatprep.subr.bf16.mxu0 %v1066
    %1317 = vmatpush1.bf16.msra.mxu0 %v1065
    %1318 = vmatprep.subr.bf16.mxu0 %v1070
    %1319 = vmatpush1.bf16.msra.mxu0 %v1069
    %1320 = vmatprep.subr.bf16.mxu0 %v1074
    %1321 = vmatpush1.bf16.msra.mxu0 %v1073
    %1322 = vmatprep.subr.bf16.mxu0 %v1078
    %1323 = vmatpush1.bf16.msra.mxu0 %v1077
    %1324 = vmatprep.subr.bf16.mxu0 %v1082
    %1325 = vmatpush1.bf16.msra.mxu0 %v1081
    %1326 = vmatprep.subr.bf16.mxu0 %v1086
    %1327 = vmatpush1.bf16.msra.mxu0 %v1085
    %1328 = vmatprep.subr.bf16.mxu0 %v1090
    %1329 = vmatpush1.bf16.msra.mxu0 %v1089
    %1330 = vmatprep.subr.bf16.mxu0 %v1094
    %1331 = vmatpush1.bf16.msra.mxu0 %v1093
    %1332 = vmatprep.subr.bf16.mxu0 %v1098
    %1333 = vmatpush1.bf16.msra.mxu0 %v1097
    %1334 = vmatprep.mubr.bf16.mxu0 %v448
    %1335 = vmatmul.mubr.bf16.gmra.mrb[0].mxu0 %v447
    %v1336 = vpop.f32.mrb[0].mxu0
    %v1337 = vadd.f32 %v1264, %v1336
    %v1338 = vpop.f32.mrb[0].mxu0
    %v1339 = vadd.f32 %v1266, %v1338
    %v1340 = vpop.f32.mrb[0].mxu0
    %v1341 = vadd.f32 %v1268, %v1340
    %v1342 = vpop.f32.mrb[0].mxu0
    %v1343 = vadd.f32 %v1270, %v1342
    %1344 = vmatprep.mubr.bf16.mxu0 %v452
    %1345 = vmatmul.mubr.bf16.gmra.mrb[0].mxu0 %v451
    %v1346 = vpop.f32.mrb[0].mxu0
    %v1347 = vadd.f32 %v1274, %v1346
    %v1348 = vpop.f32.mrb[0].mxu0
    %v1349 = vadd.f32 %v1276, %v1348
    %v1350 = vpop.f32.mrb[0].mxu0
    %v1351 = vadd.f32 %v1278, %v1350
    %v1352 = vpop.f32.mrb[0].mxu0
    %v1353 = vadd.f32 %v1280, %v1352
    %1354 = vmatprep.mubr.bf16.mxu0 %v456
    %1355 = vmatmul.mubr.bf16.gmra.mrb[0].mxu0 %v455
    %v1356 = vpop.f32.mrb[0].mxu0
    %v1357 = vadd.f32 %v1284, %v1356
    %v1358 = vpop.f32.mrb[0].mxu0
    %v1359 = vadd.f32 %v1286, %v1358
    %v1360 = vpop.f32.mrb[0].mxu0
    %v1361 = vadd.f32 %v1288, %v1360
    %v1362 = vpop.f32.mrb[0].mxu0
    %v1363 = vadd.f32 %v1290, %v1362
    %1364 = vmatprep.mubr.bf16.mxu0 %v460
    %1365 = vmatmul.mubr.bf16.gmra.mrb[0].mxu0 %v459
    %v1366 = vpop.f32.mrb[0].mxu0
    %v1367 = vadd.f32 %v1294, %v1366
    %v1368 = vpop.f32.mrb[0].mxu0
    %v1369 = vadd.f32 %v1296, %v1368
    %v1370 = vpop.f32.mrb[0].mxu0
    %v1371 = vadd.f32 %v1298, %v1370
    %v1372 = vpop.f32.mrb[0].mxu0
    %v1373 = vadd.f32 %v1300, %v1372
    %1374 = vdwg.mxu0
    %1375 = vmatprep.subr.bf16.mxu0 %v976
    %1376 = vmatpush1.bf16.msra.mxu0 %v975
    %1377 = vmatprep.subr.bf16.mxu0 %v980
    %1378 = vmatpush1.bf16.msra.mxu0 %v979
    %1379 = vmatprep.subr.bf16.mxu0 %v984
    %1380 = vmatpush1.bf16.msra.mxu0 %v983
    %1381 = vmatprep.subr.bf16.mxu0 %v988
    %1382 = vmatpush1.bf16.msra.mxu0 %v987
    %1383 = vmatprep.subr.bf16.mxu0 %v992
    %1384 = vmatpush1.bf16.msra.mxu0 %v991
    %1385 = vmatprep.subr.bf16.mxu0 %v996
    %1386 = vmatpush1.bf16.msra.mxu0 %v995
    %1387 = vmatprep.subr.bf16.mxu0 %v1000
    %1388 = vmatpush1.bf16.msra.mxu0 %v999
    %1389 = vmatprep.subr.bf16.mxu0 %v1004
    %1390 = vmatpush1.bf16.msra.mxu0 %v1003
    %1391 = vmatprep.subr.bf16.mxu0 %v1008
    %1392 = vmatpush1.bf16.msra.mxu0 %v1007
    %1393 = vmatprep.subr.bf16.mxu0 %v1012
    %1394 = vmatpush1.bf16.msra.mxu0 %v1011
    %1395 = vmatprep.subr.bf16.mxu0 %v1016
    %1396 = vmatpush1.bf16.msra.mxu0 %v1015
    %1397 = vmatprep.subr.bf16.mxu0 %v1020
    %1398 = vmatpush1.bf16.msra.mxu0 %v1019
    %1399 = vmatprep.subr.bf16.mxu0 %v1024
    %1400 = vmatpush1.bf16.msra.mxu0 %v1023
    %1401 = vmatprep.subr.bf16.mxu0 %v1028
    %1402 = vmatpush1.bf16.msra.mxu0 %v1027
    %1403 = vmatprep.subr.bf16.mxu0 %v1032
    %1404 = vmatpush1.bf16.msra.mxu0 %v1031
    %1405 = vmatprep.subr.bf16.mxu0 %v1036
    %1406 = vmatpush1.bf16.msra.mxu0 %v1035
    %1407 = vmatprep.mubr.bf16.mxu0 %v446
    %1408 = vmatmul.mubr.bf16.gmra.mrb[0].mxu0 %v445
    %v1409 = vpop.f32.mrb[0].mxu0
    %v1410 = vadd.f32 0.0, %v1409
    %v1411 = vpop.f32.mrb[0].mxu0
    %v1412 = vadd.f32 0.0, %v1411
    %v1413 = vpop.f32.mrb[0].mxu0
    %v1414 = vadd.f32 0.0, %v1413
    %v1415 = vpop.f32.mrb[0].mxu0
    %v1416 = vadd.f32 0.0, %v1415
    %1417 = vmatprep.mubr.bf16.mxu0 %v450
    %1418 = vmatmul.mubr.bf16.gmra.mrb[0].mxu0 %v449
    %v1419 = vpop.f32.mrb[0].mxu0
    %v1420 = vadd.f32 0.0, %v1419
    %v1421 = vpop.f32.mrb[0].mxu0
    %v1422 = vadd.f32 0.0, %v1421
    %v1423 = vpop.f32.mrb[0].mxu0
    %v1424 = vadd.f32 0.0, %v1423
    %v1425 = vpop.f32.mrb[0].mxu0
    %v1426 = vadd.f32 0.0, %v1425
    %1427 = vmatprep.mubr.bf16.mxu0 %v454
    %1428 = vmatmul.mubr.bf16.gmra.mrb[0].mxu0 %v453
    %v1429 = vpop.f32.mrb[0].mxu0
    %v1430 = vadd.f32 0.0, %v1429
    %v1431 = vpop.f32.mrb[0].mxu0
    %v1432 = vadd.f32 0.0, %v1431
    %v1433 = vpop.f32.mrb[0].mxu0
    %v1434 = vadd.f32 0.0, %v1433
    %v1435 = vpop.f32.mrb[0].mxu0
    %v1436 = vadd.f32 0.0, %v1435
    %1437 = vmatprep.mubr.bf16.mxu0 %v458
    %1438 = vmatmul.mubr.bf16.gmra.mrb[0].mxu0 %v457
    %v1439 = vpop.f32.mrb[0].mxu0
    %v1440 = vadd.f32 0.0, %v1439
    %v1441 = vpop.f32.mrb[0].mxu0
    %v1442 = vadd.f32 0.0, %v1441
    %v1443 = vpop.f32.mrb[0].mxu0
    %v1444 = vadd.f32 0.0, %v1443
    %v1445 = vpop.f32.mrb[0].mxu0
    %v1446 = vadd.f32 0.0, %v1445
    %1447 = vdwg.mxu0
    %1448 = vmatprep.subr.bf16.mxu0 %v1040
    %1449 = vmatpush1.bf16.msra.mxu0 %v1039
    %1450 = vmatprep.subr.bf16.mxu0 %v1044
    %1451 = vmatpush1.bf16.msra.mxu0 %v1043
    %1452 = vmatprep.subr.bf16.mxu0 %v1048
    %1453 = vmatpush1.bf16.msra.mxu0 %v1047
    %1454 = vmatprep.subr.bf16.mxu0 %v1052
    %1455 = vmatpush1.bf16.msra.mxu0 %v1051
    %1456 = vmatprep.subr.bf16.mxu0 %v1056
    %1457 = vmatpush1.bf16.msra.mxu0 %v1055
    %1458 = vmatprep.subr.bf16.mxu0 %v1060
    %1459 = vmatpush1.bf16.msra.mxu0 %v1059
    %1460 = vmatprep.subr.bf16.mxu0 %v1064
    %1461 = vmatpush1.bf16.msra.mxu0 %v1063
    %1462 = vmatprep.subr.bf16.mxu0 %v1068
    %1463 = vmatpush1.bf16.msra.mxu0 %v1067
    %1464 = vmatprep.subr.bf16.mxu0 %v1072
    %1465 = vmatpush1.bf16.msra.mxu0 %v1071
    %1466 = vmatprep.subr.bf16.mxu0 %v1076
    %1467 = vmatpush1.bf16.msra.mxu0 %v1075
    %1468 = vmatprep.subr.bf16.mxu0 %v1080
    %1469 = vmatpush1.bf16.msra.mxu0 %v1079
    %1470 = vmatprep.subr.bf16.mxu0 %v1084
    %1471 = vmatpush1.bf16.msra.mxu0 %v1083
    %1472 = vmatprep.subr.bf16.mxu0 %v1088
    %1473 = vmatpush1.bf16.msra.mxu0 %v1087
    %1474 = vmatprep.subr.bf16.mxu0 %v1092
    %1475 = vmatpush1.bf16.msra.mxu0 %v1091
    %1476 = vmatprep.subr.bf16.mxu0 %v1096
    %1477 = vmatpush1.bf16.msra.mxu0 %v1095
    %1478 = vmatprep.subr.bf16.mxu0 %v1100
    %1479 = vmatpush1.bf16.msra.mxu0 %v1099
    %1480 = vmatprep.mubr.bf16.mxu0 %v448
    %1481 = vmatmul.mubr.bf16.gmra.mrb[0].mxu0 %v447
    %v1482 = vpop.f32.mrb[0].mxu0
    %v1483 = vadd.f32 %v1410, %v1482
    %v1484 = vpop.f32.mrb[0].mxu0
    %v1485 = vadd.f32 %v1412, %v1484
    %v1486 = vpop.f32.mrb[0].mxu0
    %v1487 = vadd.f32 %v1414, %v1486
    %v1488 = vpop.f32.mrb[0].mxu0
    %v1489 = vadd.f32 %v1416, %v1488
    %1490 = vmatprep.mubr.bf16.mxu0 %v452
    %1491 = vmatmul.mubr.bf16.gmra.mrb[0].mxu0 %v451
    %v1492 = vpop.f32.mrb[0].mxu0
    %v1493 = vadd.f32 %v1420, %v1492
    %v1494 = vpop.f32.mrb[0].mxu0
    %v1495 = vadd.f32 %v1422, %v1494
    %v1496 = vpop.f32.mrb[0].mxu0
    %v1497 = vadd.f32 %v1424, %v1496
    %v1498 = vpop.f32.mrb[0].mxu0
    %v1499 = vadd.f32 %v1426, %v1498
    %1500 = vmatprep.mubr.bf16.mxu0 %v456
    %1501 = vmatmul.mubr.bf16.gmra.mrb[0].mxu0 %v455
    %v1502 = vpop.f32.mrb[0].mxu0
    %v1503 = vadd.f32 %v1430, %v1502
    %v1504 = vpop.f32.mrb[0].mxu0
    %v1505 = vadd.f32 %v1432, %v1504
    %v1506 = vpop.f32.mrb[0].mxu0
    %v1507 = vadd.f32 %v1434, %v1506
    %v1508 = vpop.f32.mrb[0].mxu0
    %v1509 = vadd.f32 %v1436, %v1508
    %1510 = vmatprep.mubr.bf16.mxu0 %v460
    %1511 = vmatmul.mubr.bf16.gmra.mrb[0].mxu0 %v459
    %v1512 = vpop.f32.mrb[0].mxu0
    %v1513 = vadd.f32 %v1440, %v1512
    %v1514 = vpop.f32.mrb[0].mxu0
    %v1515 = vadd.f32 %v1442, %v1514
    %v1516 = vpop.f32.mrb[0].mxu0
    %v1517 = vadd.f32 %v1444, %v1516
    %v1518 = vpop.f32.mrb[0].mxu0
    %v1519 = vadd.f32 %v1446, %v1518
    %1520 = vdwg.mxu0
    %v1521 = vadd.f32 %v1337, %v1341
    %v1522 = vadd.f32 %v1521, %v1347
    %v1523 = vadd.f32 %v1522, %v1351
    %v1524 = vadd.f32 %v1523, %v1357
    %v1525 = vadd.f32 %v1524, %v1361
    %v1526 = vadd.f32 %v1525, %v1367
    %v1527 = vadd.f32 %v1526, %v1371
    %v1528 = vrot.slane %v1527, 4
    %v1529 = vadd.f32 %v1527, %v1528
    %v1530 = vrot.slane %v1529, 2
    %v1531 = vadd.f32 %v1529, %v1530
    %v1532 = vrot.slane %v1531, 1
    %v1533 = vadd.f32 %v1531, %v1532
    %v1534 = vadd.f32 %v1339, %v1343
    %v1535 = vadd.f32 %v1534, %v1349
    %v1536 = vadd.f32 %v1535, %v1353
    %v1537 = vadd.f32 %v1536, %v1359
    %v1538 = vadd.f32 %v1537, %v1363
    %v1539 = vadd.f32 %v1538, %v1369
    %v1540 = vadd.f32 %v1539, %v1373
    %v1541 = vrot.slane %v1540, 4
    %v1542 = vadd.f32 %v1540, %v1541
    %v1543 = vrot.slane %v1542, 2
    %v1544 = vadd.f32 %v1542, %v1543
    %v1545 = vrot.slane %v1544, 1
    %v1546 = vadd.f32 %v1544, %v1545
    %v1547 = vadd.f32 %v1483, %v1487
    %v1548 = vadd.f32 %v1547, %v1493
    %v1549 = vadd.f32 %v1548, %v1497
    %v1550 = vadd.f32 %v1549, %v1503
    %v1551 = vadd.f32 %v1550, %v1507
    %v1552 = vadd.f32 %v1551, %v1513
    %v1553 = vadd.f32 %v1552, %v1517
    %v1554 = vrot.slane %v1553, 4
    %v1555 = vadd.f32 %v1553, %v1554
    %v1556 = vrot.slane %v1555, 2
    %v1557 = vadd.f32 %v1555, %v1556
    %v1558 = vrot.slane %v1557, 1
    %v1559 = vadd.f32 %v1557, %v1558
    %v1560 = vadd.f32 %v1485, %v1489
    %v1561 = vadd.f32 %v1560, %v1495
    %v1562 = vadd.f32 %v1561, %v1499
    %v1563 = vadd.f32 %v1562, %v1505
    %v1564 = vadd.f32 %v1563, %v1509
    %v1565 = vadd.f32 %v1564, %v1515
    %v1566 = vadd.f32 %v1565, %v1519
    %v1567 = vrot.slane %v1566, 4
    %v1568 = vadd.f32 %v1566, %v1567
    %v1569 = vrot.slane %v1568, 2
    %v1570 = vadd.f32 %v1568, %v1569
    %v1571 = vrot.slane %v1570, 1
    %v1572 = vadd.f32 %v1570, %v1571
    %v1573 = vrcp.pop 64.0
    %v1574 = vmul.f32 %v1533, %v1573
    %v1575 = vmul.f32 %v1546, %v1573
    %v1576 = vmul.f32 %v1559, %v1573
    %v1577 = vmul.f32 %v1572, %v1573
    %v1578 = vsub.f32 %v1337, %v1574
    %v1579 = vsub.f32 %v1339, %v1575
    %v1580 = vsub.f32 %v1483, %v1576
    %v1581 = vsub.f32 %v1485, %v1577
    %v1582 = vsub.f32 %v1341, %v1574
    %v1583 = vsub.f32 %v1343, %v1575
    %v1584 = vsub.f32 %v1487, %v1576
    %v1585 = vsub.f32 %v1489, %v1577
    %v1586 = vsub.f32 %v1347, %v1574
    %v1587 = vsub.f32 %v1349, %v1575
    %v1588 = vsub.f32 %v1493, %v1576
    %v1589 = vsub.f32 %v1495, %v1577
    %v1590 = vsub.f32 %v1351, %v1574
    %v1591 = vsub.f32 %v1353, %v1575
    %v1592 = vsub.f32 %v1497, %v1576
    %v1593 = vsub.f32 %v1499, %v1577
    %v1594 = vsub.f32 %v1357, %v1574
    %v1595 = vsub.f32 %v1359, %v1575
    %v1596 = vsub.f32 %v1503, %v1576
    %v1597 = vsub.f32 %v1505, %v1577
    %v1598 = vsub.f32 %v1361, %v1574
    %v1599 = vsub.f32 %v1363, %v1575
    %v1600 = vsub.f32 %v1507, %v1576
    %v1601 = vsub.f32 %v1509, %v1577
    %v1602 = vsub.f32 %v1367, %v1574
    %v1603 = vsub.f32 %v1369, %v1575
    %v1604 = vsub.f32 %v1513, %v1576
    %v1605 = vsub.f32 %v1515, %v1577
    %v1606 = vsub.f32 %v1371, %v1574
    %v1607 = vsub.f32 %v1373, %v1575
    %v1608 = vsub.f32 %v1517, %v1576
    %v1609 = vsub.f32 %v1519, %v1577
    %v1610 = vmul.f32 %v1578, %v1578
    %v1611 = vmul.f32 %v1579, %v1579
    %v1612 = vmul.f32 %v1580, %v1580
    %v1613 = vmul.f32 %v1581, %v1581
    %v1614 = vmul.f32 %v1582, %v1582
    %v1615 = vmul.f32 %v1583, %v1583
    %v1616 = vmul.f32 %v1584, %v1584
    %v1617 = vmul.f32 %v1585, %v1585
    %v1618 = vmul.f32 %v1586, %v1586
    %v1619 = vmul.f32 %v1587, %v1587
    %v1620 = vmul.f32 %v1588, %v1588
    %v1621 = vmul.f32 %v1589, %v1589
    %v1622 = vmul.f32 %v1590, %v1590
    %v1623 = vmul.f32 %v1591, %v1591
    %v1624 = vmul.f32 %v1592, %v1592
    %v1625 = vmul.f32 %v1593, %v1593
    %v1626 = vmul.f32 %v1594, %v1594
    %v1627 = vmul.f32 %v1595, %v1595
    %v1628 = vmul.f32 %v1596, %v1596
    %v1629 = vmul.f32 %v1597, %v1597
    %v1630 = vmul.f32 %v1598, %v1598
    %v1631 = vmul.f32 %v1599, %v1599
    %v1632 = vmul.f32 %v1600, %v1600
    %v1633 = vmul.f32 %v1601, %v1601
    %v1634 = vmul.f32 %v1602, %v1602
    %v1635 = vmul.f32 %v1603, %v1603
    %v1636 = vmul.f32 %v1604, %v1604
    %v1637 = vmul.f32 %v1605, %v1605
    %v1638 = vmul.f32 %v1606, %v1606
    %v1639 = vmul.f32 %v1607, %v1607
    %v1640 = vmul.f32 %v1608, %v1608
    %v1641 = vmul.f32 %v1609, %v1609
    %v1642 = vadd.f32 %v1610, %v1614
    %v1643 = vadd.f32 %v1642, %v1618
    %v1644 = vadd.f32 %v1643, %v1622
    %v1645 = vadd.f32 %v1644, %v1626
    %v1646 = vadd.f32 %v1645, %v1630
    %v1647 = vadd.f32 %v1646, %v1634
    %v1648 = vadd.f32 %v1647, %v1638
    %v1649 = vrot.slane %v1648, 4
    %v1650 = vadd.f32 %v1648, %v1649
    %v1651 = vrot.slane %v1650, 2
    %v1652 = vadd.f32 %v1650, %v1651
    %v1653 = vrot.slane %v1652, 1
    %v1654 = vadd.f32 %v1652, %v1653
    %v1655 = vadd.f32 %v1611, %v1615
    %v1656 = vadd.f32 %v1655, %v1619
    %v1657 = vadd.f32 %v1656, %v1623
    %v1658 = vadd.f32 %v1657, %v1627
    %v1659 = vadd.f32 %v1658, %v1631
    %v1660 = vadd.f32 %v1659, %v1635
    %v1661 = vadd.f32 %v1660, %v1639
    %v1662 = vrot.slane %v1661, 4
    %v1663 = vadd.f32 %v1661, %v1662
    %v1664 = vrot.slane %v1663, 2
    %v1665 = vadd.f32 %v1663, %v1664
    %v1666 = vrot.slane %v1665, 1
    %v1667 = vadd.f32 %v1665, %v1666
    %v1668 = vadd.f32 %v1612, %v1616
    %v1669 = vadd.f32 %v1668, %v1620
    %v1670 = vadd.f32 %v1669, %v1624
    %v1671 = vadd.f32 %v1670, %v1628
    %v1672 = vadd.f32 %v1671, %v1632
    %v1673 = vadd.f32 %v1672, %v1636
    %v1674 = vadd.f32 %v1673, %v1640
    %v1675 = vrot.slane %v1674, 4
    %v1676 = vadd.f32 %v1674, %v1675
    %v1677 = vrot.slane %v1676, 2
    %v1678 = vadd.f32 %v1676, %v1677
    %v1679 = vrot.slane %v1678, 1
    %v1680 = vadd.f32 %v1678, %v1679
    %v1681 = vadd.f32 %v1613, %v1617
    %v1682 = vadd.f32 %v1681, %v1621
    %v1683 = vadd.f32 %v1682, %v1625
    %v1684 = vadd.f32 %v1683, %v1629
    %v1685 = vadd.f32 %v1684, %v1633
    %v1686 = vadd.f32 %v1685, %v1637
    %v1687 = vadd.f32 %v1686, %v1641
    %v1688 = vrot.slane %v1687, 4
    %v1689 = vadd.f32 %v1687, %v1688
    %v1690 = vrot.slane %v1689, 2
    %v1691 = vadd.f32 %v1689, %v1690
    %v1692 = vrot.slane %v1691, 1
    %v1693 = vadd.f32 %v1691, %v1692
    %v1694 = vmul.f32 %v1654, %v1573
    %v1695 = vmul.f32 %v1667, %v1573
    %v1696 = vmul.f32 %v1680, %v1573
    %v1697 = vmul.f32 %v1693, %v1573
    %v1698 = vld [vmem:[#allocation10] sm:$0xf]
    %v1699 = vadd.f32 %v1694, 1e-05
    %v1700 = vadd.f32 %v1695, 1e-05
    %v1701 = vadd.f32 %v1696, 1e-05
    %v1702 = vadd.f32 %v1697, 1e-05
    %v1703 = vrsqrt.pop %v1699
    %v1704 = vrsqrt.pop %v1700
    %v1705 = vrsqrt.pop %v1701
    %v1706 = vrsqrt.pop %v1702
    %v1711 = vcombine.low %v1703, %v1704
    %v1712 = vcombine.low %v1705, %v1706
    %v1714 = vunpack.c.l.s4 1966171168
    %v1715 = vunpack.c.0.s8 %v1714
    %v1716 = vlaneseq
    %v1717 = vshrl.u32 %v1716, 7
    %v1718 = vsub.s32 %v1715, %v1717
    %v1719 = vrot.slane %v1711, %v1718
    %v1721 = vunpack.c.l.s4 1966171168
    %v1722 = vunpack.c.0.s8 %v1721
    %v1723 = vlaneseq
    %v1724 = vshrl.u32 %v1723, 7
    %v1725 = vsub.s32 %v1722, %v1724
    %v1726 = vrot.slane %v1712, %v1725
    %v1727 = vcombine.low %v1719, %v1726
    %v1729 = vunpack.c.l.s4 1966171168
    %v1730 = vunpack.c.0.s8 %v1729
    %v1731 = vlaneseq
    %v1732 = vshrl.u32 %v1731, 7
    %v1733 = vsub.s32 %v1730, %v1732
    %v1734 = vrot.slane %v1727, %v1733
    %v1736 = vmul.f32 %v1698, %v1734
    %v1737 = vld [vmem:[#allocation11] sm:$0xf]
    %v1739 = vlaneseq
    %v1740 = vshrl.u32 %v1739, 7
    %v1741 = vsub.s32 0, %v1740
    %v1742 = vrot.slane %v1736, %v1741
    %v1743 = vlaneseq
    %v1744 = vshrl.u32 %v1743, 7
    %v1745 = vsub.s32 1, %v1744
    %v1746 = vrot.slane %v1736, %v1745
    %v1747 = vlaneseq
    %v1748 = vshrl.u32 %v1747, 7
    %v1749 = vsub.s32 2, %v1748
    %v1750 = vrot.slane %v1736, %v1749
    %v1751 = vlaneseq
    %v1752 = vshrl.u32 %v1751, 7
    %v1753 = vsub.s32 3, %v1752
    %v1754 = vrot.slane %v1736, %v1753
    %v1759 = vmul.f32 %v1574, %v1742
    %v1760 = vmul.f32 %v1575, %v1746
    %v1761 = vmul.f32 %v1576, %v1750
    %v1762 = vmul.f32 %v1577, %v1754
    %v1767 = vcombine.low %v1759, %v1760
    %v1768 = vcombine.low %v1761, %v1762
    %v1770 = vunpack.c.l.s4 1966171168
    %v1771 = vunpack.c.0.s8 %v1770
    %v1772 = vlaneseq
    %v1773 = vshrl.u32 %v1772, 7
    %v1774 = vsub.s32 %v1771, %v1773
    %v1775 = vrot.slane %v1767, %v1774
    %v1777 = vunpack.c.l.s4 1966171168
    %v1778 = vunpack.c.0.s8 %v1777
    %v1779 = vlaneseq
    %v1780 = vshrl.u32 %v1779, 7
    %v1781 = vsub.s32 %v1778, %v1780
    %v1782 = vrot.slane %v1768, %v1781
    %v1783 = vcombine.low %v1775, %v1782
    %v1785 = vunpack.c.l.s4 1966171168
    %v1786 = vunpack.c.0.s8 %v1785
    %v1787 = vlaneseq
    %v1788 = vshrl.u32 %v1787, 7
    %v1789 = vsub.s32 %v1786, %v1788
    %v1790 = vrot.slane %v1783, %v1789
    %v1792 = vsub.f32 %v1737, %v1790
    %v1793 = vmul.f32 %v1337, %v1742
    %v1794 = vmul.f32 %v1339, %v1746
    %v1795 = vmul.f32 %v1483, %v1750
    %v1796 = vmul.f32 %v1485, %v1754
    %v1797 = vmul.f32 %v1341, %v1742
    %v1798 = vmul.f32 %v1343, %v1746
    %v1799 = vmul.f32 %v1487, %v1750
    %v1800 = vmul.f32 %v1489, %v1754
    %v1801 = vmul.f32 %v1347, %v1742
    %v1802 = vmul.f32 %v1349, %v1746
    %v1803 = vmul.f32 %v1493, %v1750
    %v1804 = vmul.f32 %v1495, %v1754
    %v1805 = vmul.f32 %v1351, %v1742
    %v1806 = vmul.f32 %v1353, %v1746
    %v1807 = vmul.f32 %v1497, %v1750
    %v1808 = vmul.f32 %v1499, %v1754
    %v1809 = vmul.f32 %v1357, %v1742
    %v1810 = vmul.f32 %v1359, %v1746
    %v1811 = vmul.f32 %v1503, %v1750
    %v1812 = vmul.f32 %v1505, %v1754
    %v1813 = vmul.f32 %v1361, %v1742
    %v1814 = vmul.f32 %v1363, %v1746
    %v1815 = vmul.f32 %v1507, %v1750
    %v1816 = vmul.f32 %v1509, %v1754
    %v1817 = vmul.f32 %v1367, %v1742
    %v1818 = vmul.f32 %v1369, %v1746
    %v1819 = vmul.f32 %v1513, %v1750
    %v1820 = vmul.f32 %v1515, %v1754
    %v1821 = vmul.f32 %v1371, %v1742
    %v1822 = vmul.f32 %v1373, %v1746
    %v1823 = vmul.f32 %v1517, %v1750
    %v1824 = vmul.f32 %v1519, %v1754
    %v1826 = vlaneseq
    %v1827 = vshrl.u32 %v1826, 7
    %v1828 = vsub.s32 0, %v1827
    %v1829 = vrot.slane %v1792, %v1828
    %v1830 = vlaneseq
    %v1831 = vshrl.u32 %v1830, 7
    %v1832 = vsub.s32 1, %v1831
    %v1833 = vrot.slane %v1792, %v1832
    %v1834 = vlaneseq
    %v1835 = vshrl.u32 %v1834, 7
    %v1836 = vsub.s32 2, %v1835
    %v1837 = vrot.slane %v1792, %v1836
    %v1838 = vlaneseq
    %v1839 = vshrl.u32 %v1838, 7
    %v1840 = vsub.s32 3, %v1839
    %v1841 = vrot.slane %v1792, %v1840
    %v1846 = vadd.f32 %v1793, %v1829
    %v1847 = vadd.f32 %v1794, %v1833
    %v1848 = vadd.f32 %v1795, %v1837
    %v1849 = vadd.f32 %v1796, %v1841
    %v1850 = vadd.f32 %v1797, %v1829
    %v1851 = vadd.f32 %v1798, %v1833
    %v1852 = vadd.f32 %v1799, %v1837
    %v1853 = vadd.f32 %v1800, %v1841
    %v1854 = vadd.f32 %v1801, %v1829
    %v1855 = vadd.f32 %v1802, %v1833
    %v1856 = vadd.f32 %v1803, %v1837
    %v1857 = vadd.f32 %v1804, %v1841
    %v1858 = vadd.f32 %v1805, %v1829
    %v1859 = vadd.f32 %v1806, %v1833
    %v1860 = vadd.f32 %v1807, %v1837
    %v1861 = vadd.f32 %v1808, %v1841
    %v1862 = vadd.f32 %v1809, %v1829
    %v1863 = vadd.f32 %v1810, %v1833
    %v1864 = vadd.f32 %v1811, %v1837
    %v1865 = vadd.f32 %v1812, %v1841
    %v1866 = vadd.f32 %v1813, %v1829
    %v1867 = vadd.f32 %v1814, %v1833
    %v1868 = vadd.f32 %v1815, %v1837
    %v1869 = vadd.f32 %v1816, %v1841
    %v1870 = vadd.f32 %v1817, %v1829
    %v1871 = vadd.f32 %v1818, %v1833
    %v1872 = vadd.f32 %v1819, %v1837
    %v1873 = vadd.f32 %v1820, %v1841
    %v1874 = vadd.f32 %v1821, %v1829
    %v1875 = vadd.f32 %v1822, %v1833
    %v1876 = vadd.f32 %v1823, %v1837
    %v1877 = vadd.f32 %v1824, %v1841
    %vm1878 = vcmp.gt.f32.partialorder %v1846, 0.0
    %vm1879 = vcmp.gt.f32.partialorder %v1847, 0.0
    %vm1880 = vcmp.gt.f32.partialorder %v1848, 0.0
    %vm1881 = vcmp.gt.f32.partialorder %v1849, 0.0
    %vm1882 = vcmp.gt.f32.partialorder %v1850, 0.0
    %vm1883 = vcmp.gt.f32.partialorder %v1851, 0.0
    %vm1884 = vcmp.gt.f32.partialorder %v1852, 0.0
    %vm1885 = vcmp.gt.f32.partialorder %v1853, 0.0
    %vm1886 = vcmp.gt.f32.partialorder %v1854, 0.0
    %vm1887 = vcmp.gt.f32.partialorder %v1855, 0.0
    %vm1888 = vcmp.gt.f32.partialorder %v1856, 0.0
    %vm1889 = vcmp.gt.f32.partialorder %v1857, 0.0
    %vm1890 = vcmp.gt.f32.partialorder %v1858, 0.0
    %vm1891 = vcmp.gt.f32.partialorder %v1859, 0.0
    %vm1892 = vcmp.gt.f32.partialorder %v1860, 0.0
    %vm1893 = vcmp.gt.f32.partialorder %v1861, 0.0
    %vm1894 = vcmp.gt.f32.partialorder %v1862, 0.0
    %vm1895 = vcmp.gt.f32.partialorder %v1863, 0.0
    %vm1896 = vcmp.gt.f32.partialorder %v1864, 0.0
    %vm1897 = vcmp.gt.f32.partialorder %v1865, 0.0
    %vm1898 = vcmp.gt.f32.partialorder %v1866, 0.0
    %vm1899 = vcmp.gt.f32.partialorder %v1867, 0.0
    %vm1900 = vcmp.gt.f32.partialorder %v1868, 0.0
    %vm1901 = vcmp.gt.f32.partialorder %v1869, 0.0
    %vm1902 = vcmp.gt.f32.partialorder %v1870, 0.0
    %vm1903 = vcmp.gt.f32.partialorder %v1871, 0.0
    %vm1904 = vcmp.gt.f32.partialorder %v1872, 0.0
    %vm1905 = vcmp.gt.f32.partialorder %v1873, 0.0
    %vm1906 = vcmp.gt.f32.partialorder %v1874, 0.0
    %vm1907 = vcmp.gt.f32.partialorder %v1875, 0.0
    %vm1908 = vcmp.gt.f32.partialorder %v1876, 0.0
    %vm1909 = vcmp.gt.f32.partialorder %v1877, 0.0
    %v1910 = vmul.f32 %v1846, 0.2
    %v1911 = vmul.f32 %v1847, 0.2
    %v1912 = vmul.f32 %v1848, 0.2
    %v1913 = vmul.f32 %v1849, 0.2
    %v1914 = vmul.f32 %v1850, 0.2
    %v1915 = vmul.f32 %v1851, 0.2
    %v1916 = vmul.f32 %v1852, 0.2
    %v1917 = vmul.f32 %v1853, 0.2
    %v1918 = vmul.f32 %v1854, 0.2
    %v1919 = vmul.f32 %v1855, 0.2
    %v1920 = vmul.f32 %v1856, 0.2
    %v1921 = vmul.f32 %v1857, 0.2
    %v1922 = vmul.f32 %v1858, 0.2
    %v1923 = vmul.f32 %v1859, 0.2
    %v1924 = vmul.f32 %v1860, 0.2
    %v1925 = vmul.f32 %v1861, 0.2
    %v1926 = vmul.f32 %v1862, 0.2
    %v1927 = vmul.f32 %v1863, 0.2
    %v1928 = vmul.f32 %v1864, 0.2
    %v1929 = vmul.f32 %v1865, 0.2
    %v1930 = vmul.f32 %v1866, 0.2
    %v1931 = vmul.f32 %v1867, 0.2
    %v1932 = vmul.f32 %v1868, 0.2
    %v1933 = vmul.f32 %v1869, 0.2
    %v1934 = vmul.f32 %v1870, 0.2
    %v1935 = vmul.f32 %v1871, 0.2
    %v1936 = vmul.f32 %v1872, 0.2
    %v1937 = vmul.f32 %v1873, 0.2
    %v1938 = vmul.f32 %v1874, 0.2
    %v1939 = vmul.f32 %v1875, 0.2
    %v1940 = vmul.f32 %v1876, 0.2
    %v1941 = vmul.f32 %v1877, 0.2
    %v1942 = vsel %vm1878, %v1846, %v1910
    %v1943 = vsel %vm1879, %v1847, %v1911
    %v1944 = vsel %vm1880, %v1848, %v1912
    %v1945 = vsel %vm1881, %v1849, %v1913
    %v1946 = vsel %vm1882, %v1850, %v1914
    %v1947 = vsel %vm1883, %v1851, %v1915
    %v1948 = vsel %vm1884, %v1852, %v1916
    %v1949 = vsel %vm1885, %v1853, %v1917
    %v1950 = vsel %vm1886, %v1854, %v1918
    %v1951 = vsel %vm1887, %v1855, %v1919
    %v1952 = vsel %vm1888, %v1856, %v1920
    %v1953 = vsel %vm1889, %v1857, %v1921
    %v1954 = vsel %vm1890, %v1858, %v1922
    %v1955 = vsel %vm1891, %v1859, %v1923
    %v1956 = vsel %vm1892, %v1860, %v1924
    %v1957 = vsel %vm1893, %v1861, %v1925
    %v1958 = vsel %vm1894, %v1862, %v1926
    %v1959 = vsel %vm1895, %v1863, %v1927
    %v1960 = vsel %vm1896, %v1864, %v1928
    %v1961 = vsel %vm1897, %v1865, %v1929
    %v1962 = vsel %vm1898, %v1866, %v1930
    %v1963 = vsel %vm1899, %v1867, %v1931
    %v1964 = vsel %vm1900, %v1868, %v1932
    %v1965 = vsel %vm1901, %v1869, %v1933
    %v1966 = vsel %vm1902, %v1870, %v1934
    %v1967 = vsel %vm1903, %v1871, %v1935
    %v1968 = vsel %vm1904, %v1872, %v1936
    %v1969 = vsel %vm1905, %v1873, %v1937
    %v1970 = vsel %vm1906, %v1874, %v1938
    %v1971 = vsel %vm1907, %v1875, %v1939
    %v1972 = vsel %vm1908, %v1876, %v1940
    %v1973 = vsel %vm1909, %v1877, %v1941
    %v1974 = vpack.c.bf16 %v1946, %v1942
    %v1975 = vpack.c.bf16 %v1947, %v1943
    %v1976 = vpack.c.bf16 %v1948, %v1944
    %v1977 = vpack.c.bf16 %v1949, %v1945
    %v1978 = vpack.c.bf16 %v1954, %v1950
    %v1979 = vpack.c.bf16 %v1955, %v1951
    %v1980 = vpack.c.bf16 %v1956, %v1952
    %v1981 = vpack.c.bf16 %v1957, %v1953
    %v1982 = vpack.c.bf16 %v1962, %v1958
    %v1983 = vpack.c.bf16 %v1963, %v1959
    %v1984 = vpack.c.bf16 %v1964, %v1960
    %v1985 = vpack.c.bf16 %v1965, %v1961
    %v1986 = vpack.c.bf16 %v1970, %v1966
    %v1987 = vpack.c.bf16 %v1971, %v1967
    %v1988 = vpack.c.bf16 %v1972, %v1968
    %v1989 = vpack.c.bf16 %v1973, %v1969
    %v1990 = vld [vmem:[#allocation13] sm:$0xff]
    %v1991 = vld [vmem:[#allocation13 + $0x8] sm:$0xff]
    %v1992 = vld [vmem:[#allocation13 + $0x10] sm:$0xff]
    %v1993 = vld [vmem:[#allocation13 + $0x18] sm:$0xff]
    %v1994 = vld [vmem:[#allocation13 + $0x20] sm:$0xff]
    %v1995 = vld [vmem:[#allocation13 + $0x28] sm:$0xff]
    %v1996 = vld [vmem:[#allocation13 + $0x30] sm:$0xff]
    %v1997 = vld [vmem:[#allocation13 + $0x38] sm:$0xff]
    %v1998 = vld [vmem:[#allocation13 + $0x40] sm:$0xff]
    %v1999 = vld [vmem:[#allocation13 + $0x48] sm:$0xff]
    %v2000 = vld [vmem:[#allocation13 + $0x50] sm:$0xff]
    %v2001 = vld [vmem:[#allocation13 + $0x58] sm:$0xff]
    %v2002 = vld [vmem:[#allocation13 + $0x60] sm:$0xff]
    %v2003 = vld [vmem:[#allocation13 + $0x68] sm:$0xff]
    %v2004 = vld [vmem:[#allocation13 + $0x70] sm:$0xff]
    %v2005 = vld [vmem:[#allocation13 + $0x78] sm:$0xff]
    %v2006 = vld [vmem:[#allocation13 + $0x80] sm:$0xff]
    %v2007 = vld [vmem:[#allocation13 + $0x88] sm:$0xff]
    %v2008 = vld [vmem:[#allocation13 + $0x90] sm:$0xff]
    %v2009 = vld [vmem:[#allocation13 + $0x98] sm:$0xff]
    %v2010 = vld [vmem:[#allocation13 + $0xa0] sm:$0xff]
    %v2011 = vld [vmem:[#allocation13 + $0xa8] sm:$0xff]
    %v2012 = vld [vmem:[#allocation13 + $0xb0] sm:$0xff]
    %v2013 = vld [vmem:[#allocation13 + $0xb8] sm:$0xff]
    %v2014 = vld [vmem:[#allocation13 + $0xc0] sm:$0xff]
    %v2015 = vld [vmem:[#allocation13 + $0xc8] sm:$0xff]
    %v2016 = vld [vmem:[#allocation13 + $0xd0] sm:$0xff]
    %v2017 = vld [vmem:[#allocation13 + $0xd8] sm:$0xff]
    %v2018 = vld [vmem:[#allocation13 + $0xe0] sm:$0xff]
    %v2019 = vld [vmem:[#allocation13 + $0xe8] sm:$0xff]
    %v2020 = vld [vmem:[#allocation13 + $0xf0] sm:$0xff]
    %v2021 = vld [vmem:[#allocation13 + $0xf8] sm:$0xff]
    %v2022 = vld [vmem:[#allocation13 + $0x100] sm:$0xff]
    %v2023 = vld [vmem:[#allocation13 + $0x108] sm:$0xff]
    %v2024 = vld [vmem:[#allocation13 + $0x110] sm:$0xff]
    %v2025 = vld [vmem:[#allocation13 + $0x118] sm:$0xff]
    %v2026 = vld [vmem:[#allocation13 + $0x120] sm:$0xff]
    %v2027 = vld [vmem:[#allocation13 + $0x128] sm:$0xff]
    %v2028 = vld [vmem:[#allocation13 + $0x130] sm:$0xff]
    %v2029 = vld [vmem:[#allocation13 + $0x138] sm:$0xff]
    %v2030 = vld [vmem:[#allocation13 + $0x140] sm:$0xff]
    %v2031 = vld [vmem:[#allocation13 + $0x148] sm:$0xff]
    %v2032 = vld [vmem:[#allocation13 + $0x150] sm:$0xff]
    %v2033 = vld [vmem:[#allocation13 + $0x158] sm:$0xff]
    %v2034 = vld [vmem:[#allocation13 + $0x160] sm:$0xff]
    %v2035 = vld [vmem:[#allocation13 + $0x168] sm:$0xff]
    %v2036 = vld [vmem:[#allocation13 + $0x170] sm:$0xff]
    %v2037 = vld [vmem:[#allocation13 + $0x178] sm:$0xff]
    %v2038 = vld [vmem:[#allocation13 + $0x180] sm:$0xff]
    %v2039 = vld [vmem:[#allocation13 + $0x188] sm:$0xff]
    %v2040 = vld [vmem:[#allocation13 + $0x190] sm:$0xff]
    %v2041 = vld [vmem:[#allocation13 + $0x198] sm:$0xff]
    %v2042 = vld [vmem:[#allocation13 + $0x1a0] sm:$0xff]
    %v2043 = vld [vmem:[#allocation13 + $0x1a8] sm:$0xff]
    %v2044 = vld [vmem:[#allocation13 + $0x1b0] sm:$0xff]
    %v2045 = vld [vmem:[#allocation13 + $0x1b8] sm:$0xff]
    %v2046 = vld [vmem:[#allocation13 + $0x1c0] sm:$0xff]
    %v2047 = vld [vmem:[#allocation13 + $0x1c8] sm:$0xff]
    %v2048 = vld [vmem:[#allocation13 + $0x1d0] sm:$0xff]
    %v2049 = vld [vmem:[#allocation13 + $0x1d8] sm:$0xff]
    %v2050 = vld [vmem:[#allocation13 + $0x1e0] sm:$0xff]
    %v2051 = vld [vmem:[#allocation13 + $0x1e8] sm:$0xff]
    %v2052 = vld [vmem:[#allocation13 + $0x1f0] sm:$0xff]
    %v2053 = vld [vmem:[#allocation13 + $0x1f8] sm:$0xff]
    %v2054 = vld [vmem:[#allocation14] sm:$0x3]
    %v2056 = vlaneseq
    %v2057 = vshrl.u32 %v2056, 7
    %v2058 = vsub.s32 0, %v2057
    %v2059 = vrot.slane %v2054, %v2058
    %v2060 = vlaneseq
    %v2061 = vshrl.u32 %v2060, 7
    %v2062 = vsub.s32 1, %v2061
    %v2063 = vrot.slane %v2054, %v2062
    %v2130 = vunpack.c.l.b16 %v1990
    %v2131 = vunpack.c.h.b16 %v1990
    %v2132 = vunpack.c.l.b16 %v1991
    %v2133 = vunpack.c.h.b16 %v1991
    %v2134 = vunpack.c.l.b16 %v1992
    %v2135 = vunpack.c.h.b16 %v1992
    %v2136 = vunpack.c.l.b16 %v1993
    %v2137 = vunpack.c.h.b16 %v1993
    %v2138 = vunpack.c.l.b16 %v1994
    %v2139 = vunpack.c.h.b16 %v1994
    %v2140 = vunpack.c.l.b16 %v1995
    %v2141 = vunpack.c.h.b16 %v1995
    %v2142 = vunpack.c.l.b16 %v1996
    %v2143 = vunpack.c.h.b16 %v1996
    %v2144 = vunpack.c.l.b16 %v1997
    %v2145 = vunpack.c.h.b16 %v1997
    %v2146 = vunpack.c.l.b16 %v1998
    %v2147 = vunpack.c.h.b16 %v1998
    %v2148 = vunpack.c.l.b16 %v1999
    %v2149 = vunpack.c.h.b16 %v1999
    %v2150 = vunpack.c.l.b16 %v2000
    %v2151 = vunpack.c.h.b16 %v2000
    %v2152 = vunpack.c.l.b16 %v2001
    %v2153 = vunpack.c.h.b16 %v2001
    %v2154 = vunpack.c.l.b16 %v2002
    %v2155 = vunpack.c.h.b16 %v2002
    %v2156 = vunpack.c.l.b16 %v2003
    %v2157 = vunpack.c.h.b16 %v2003
    %v2158 = vunpack.c.l.b16 %v2004
    %v2159 = vunpack.c.h.b16 %v2004
    %v2160 = vunpack.c.l.b16 %v2005
    %v2161 = vunpack.c.h.b16 %v2005
    %v2162 = vunpack.c.l.b16 %v2006
    %v2163 = vunpack.c.h.b16 %v2006
    %v2164 = vunpack.c.l.b16 %v2007
    %v2165 = vunpack.c.h.b16 %v2007
    %v2166 = vunpack.c.l.b16 %v2008
    %v2167 = vunpack.c.h.b16 %v2008
    %v2168 = vunpack.c.l.b16 %v2009
    %v2169 = vunpack.c.h.b16 %v2009
    %v2170 = vunpack.c.l.b16 %v2010
    %v2171 = vunpack.c.h.b16 %v2010
    %v2172 = vunpack.c.l.b16 %v2011
    %v2173 = vunpack.c.h.b16 %v2011
    %v2174 = vunpack.c.l.b16 %v2012
    %v2175 = vunpack.c.h.b16 %v2012
    %v2176 = vunpack.c.l.b16 %v2013
    %v2177 = vunpack.c.h.b16 %v2013
    %v2178 = vunpack.c.l.b16 %v2014
    %v2179 = vunpack.c.h.b16 %v2014
    %v2180 = vunpack.c.l.b16 %v2015
    %v2181 = vunpack.c.h.b16 %v2015
    %v2182 = vunpack.c.l.b16 %v2016
    %v2183 = vunpack.c.h.b16 %v2016
    %v2184 = vunpack.c.l.b16 %v2017
    %v2185 = vunpack.c.h.b16 %v2017
    %v2186 = vunpack.c.l.b16 %v2018
    %v2187 = vunpack.c.h.b16 %v2018
    %v2188 = vunpack.c.l.b16 %v2019
    %v2189 = vunpack.c.h.b16 %v2019
    %v2190 = vunpack.c.l.b16 %v2020
    %v2191 = vunpack.c.h.b16 %v2020
    %v2192 = vunpack.c.l.b16 %v2021
    %v2193 = vunpack.c.h.b16 %v2021
    %v2194 = vunpack.c.l.b16 %v2022
    %v2195 = vunpack.c.h.b16 %v2022
    %v2196 = vunpack.c.l.b16 %v2023
    %v2197 = vunpack.c.h.b16 %v2023
    %v2198 = vunpack.c.l.b16 %v2024
    %v2199 = vunpack.c.h.b16 %v2024
    %v2200 = vunpack.c.l.b16 %v2025
    %v2201 = vunpack.c.h.b16 %v2025
    %v2202 = vunpack.c.l.b16 %v2026
    %v2203 = vunpack.c.h.b16 %v2026
    %v2204 = vunpack.c.l.b16 %v2027
    %v2205 = vunpack.c.h.b16 %v2027
    %v2206 = vunpack.c.l.b16 %v2028
    %v2207 = vunpack.c.h.b16 %v2028
    %v2208 = vunpack.c.l.b16 %v2029
    %v2209 = vunpack.c.h.b16 %v2029
    %v2210 = vunpack.c.l.b16 %v2030
    %v2211 = vunpack.c.h.b16 %v2030
    %v2212 = vunpack.c.l.b16 %v2031
    %v2213 = vunpack.c.h.b16 %v2031
    %v2214 = vunpack.c.l.b16 %v2032
    %v2215 = vunpack.c.h.b16 %v2032
    %v2216 = vunpack.c.l.b16 %v2033
    %v2217 = vunpack.c.h.b16 %v2033
    %v2218 = vunpack.c.l.b16 %v2034
    %v2219 = vunpack.c.h.b16 %v2034
    %v2220 = vunpack.c.l.b16 %v2035
    %v2221 = vunpack.c.h.b16 %v2035
    %v2222 = vunpack.c.l.b16 %v2036
    %v2223 = vunpack.c.h.b16 %v2036
    %v2224 = vunpack.c.l.b16 %v2037
    %v2225 = vunpack.c.h.b16 %v2037
    %v2226 = vunpack.c.l.b16 %v2038
    %v2227 = vunpack.c.h.b16 %v2038
    %v2228 = vunpack.c.l.b16 %v2039
    %v2229 = vunpack.c.h.b16 %v2039
    %v2230 = vunpack.c.l.b16 %v2040
    %v2231 = vunpack.c.h.b16 %v2040
    %v2232 = vunpack.c.l.b16 %v2041
    %v2233 = vunpack.c.h.b16 %v2041
    %v2234 = vunpack.c.l.b16 %v2042
    %v2235 = vunpack.c.h.b16 %v2042
    %v2236 = vunpack.c.l.b16 %v2043
    %v2237 = vunpack.c.h.b16 %v2043
    %v2238 = vunpack.c.l.b16 %v2044
    %v2239 = vunpack.c.h.b16 %v2044
    %v2240 = vunpack.c.l.b16 %v2045
    %v2241 = vunpack.c.h.b16 %v2045
    %v2242 = vunpack.c.l.b16 %v2046
    %v2243 = vunpack.c.h.b16 %v2046
    %v2244 = vunpack.c.l.b16 %v2047
    %v2245 = vunpack.c.h.b16 %v2047
    %v2246 = vunpack.c.l.b16 %v2048
    %v2247 = vunpack.c.h.b16 %v2048
    %v2248 = vunpack.c.l.b16 %v2049
    %v2249 = vunpack.c.h.b16 %v2049
    %v2250 = vunpack.c.l.b16 %v2050
    %v2251 = vunpack.c.h.b16 %v2050
    %v2252 = vunpack.c.l.b16 %v2051
    %v2253 = vunpack.c.h.b16 %v2051
    %v2254 = vunpack.c.l.b16 %v2052
    %v2255 = vunpack.c.h.b16 %v2052
    %v2256 = vunpack.c.l.b16 %v2053
    %v2257 = vunpack.c.h.b16 %v2053
    %v2258 = vpack.c.b16 %v2132, %v2130
    %v2259 = vpack.c.b16 %v2133, %v2131
    %v2260 = vpack.c.b16 %v2136, %v2134
    %v2261 = vpack.c.b16 %v2137, %v2135
    %v2262 = vpack.c.b16 %v2140, %v2138
    %v2263 = vpack.c.b16 %v2141, %v2139
    %v2264 = vpack.c.b16 %v2144, %v2142
    %v2265 = vpack.c.b16 %v2145, %v2143
    %v2266 = vpack.c.b16 %v2148, %v2146
    %v2267 = vpack.c.b16 %v2149, %v2147
    %v2268 = vpack.c.b16 %v2152, %v2150
    %v2269 = vpack.c.b16 %v2153, %v2151
    %v2270 = vpack.c.b16 %v2156, %v2154
    %v2271 = vpack.c.b16 %v2157, %v2155
    %v2272 = vpack.c.b16 %v2160, %v2158
    %v2273 = vpack.c.b16 %v2161, %v2159
    %v2274 = vpack.c.b16 %v2164, %v2162
    %v2275 = vpack.c.b16 %v2165, %v2163
    %v2276 = vpack.c.b16 %v2168, %v2166
    %v2277 = vpack.c.b16 %v2169, %v2167
    %v2278 = vpack.c.b16 %v2172, %v2170
    %v2279 = vpack.c.b16 %v2173, %v2171
    %v2280 = vpack.c.b16 %v2176, %v2174
    %v2281 = vpack.c.b16 %v2177, %v2175
    %v2282 = vpack.c.b16 %v2180, %v2178
    %v2283 = vpack.c.b16 %v2181, %v2179
    %v2284 = vpack.c.b16 %v2184, %v2182
    %v2285 = vpack.c.b16 %v2185, %v2183
    %v2286 = vpack.c.b16 %v2188, %v2186
    %v2287 = vpack.c.b16 %v2189, %v2187
    %v2288 = vpack.c.b16 %v2192, %v2190
    %v2289 = vpack.c.b16 %v2193, %v2191
    %v2290 = vpack.c.b16 %v2196, %v2194
    %v2291 = vpack.c.b16 %v2197, %v2195
    %v2292 = vpack.c.b16 %v2200, %v2198
    %v2293 = vpack.c.b16 %v2201, %v2199
    %v2294 = vpack.c.b16 %v2204, %v2202
    %v2295 = vpack.c.b16 %v2205, %v2203
    %v2296 = vpack.c.b16 %v2208, %v2206
    %v2297 = vpack.c.b16 %v2209, %v2207
    %v2298 = vpack.c.b16 %v2212, %v2210
    %v2299 = vpack.c.b16 %v2213, %v2211
    %v2300 = vpack.c.b16 %v2216, %v2214
    %v2301 = vpack.c.b16 %v2217, %v2215
    %v2302 = vpack.c.b16 %v2220, %v2218
    %v2303 = vpack.c.b16 %v2221, %v2219
    %v2304 = vpack.c.b16 %v2224, %v2222
    %v2305 = vpack.c.b16 %v2225, %v2223
    %v2306 = vpack.c.b16 %v2228, %v2226
    %v2307 = vpack.c.b16 %v2229, %v2227
    %v2308 = vpack.c.b16 %v2232, %v2230
    %v2309 = vpack.c.b16 %v2233, %v2231
    %v2310 = vpack.c.b16 %v2236, %v2234
    %v2311 = vpack.c.b16 %v2237, %v2235
    %v2312 = vpack.c.b16 %v2240, %v2238
    %v2313 = vpack.c.b16 %v2241, %v2239
    %v2314 = vpack.c.b16 %v2244, %v2242
    %v2315 = vpack.c.b16 %v2245, %v2243
    %v2316 = vpack.c.b16 %v2248, %v2246
    %v2317 = vpack.c.b16 %v2249, %v2247
    %v2318 = vpack.c.b16 %v2252, %v2250
    %v2319 = vpack.c.b16 %v2253, %v2251
    %v2320 = vpack.c.b16 %v2256, %v2254
    %v2321 = vpack.c.b16 %v2257, %v2255
    %2386 = vmatprep.subr.bf16.mxu0 %v2259
    %2387 = vmatpush1.bf16.msra.mxu0 %v2258
    %2388 = vmatprep.subr.bf16.mxu0 %v2261
    %2389 = vmatpush1.bf16.msra.mxu0 %v2260
    %2390 = vmatprep.subr.bf16.mxu0 %v2263
    %2391 = vmatpush1.bf16.msra.mxu0 %v2262
    %2392 = vmatprep.subr.bf16.mxu0 %v2265
    %2393 = vmatpush1.bf16.msra.mxu0 %v2264
    %2394 = vmatprep.subr.bf16.mxu0 %v2267
    %2395 = vmatpush1.bf16.msra.mxu0 %v2266
    %2396 = vmatprep.subr.bf16.mxu0 %v2269
    %2397 = vmatpush1.bf16.msra.mxu0 %v2268
    %2398 = vmatprep.subr.bf16.mxu0 %v2271
    %2399 = vmatpush1.bf16.msra.mxu0 %v2270
    %2400 = vmatprep.subr.bf16.mxu0 %v2273
    %2401 = vmatpush1.bf16.msra.mxu0 %v2272
    %2402 = vmatprep.subr.bf16.mxu0 %v2275
    %2403 = vmatpush1.bf16.msra.mxu0 %v2274
    %2404 = vmatprep.subr.bf16.mxu0 %v2277
    %2405 = vmatpush1.bf16.msra.mxu0 %v2276
    %2406 = vmatprep.subr.bf16.mxu0 %v2279
    %2407 = vmatpush1.bf16.msra.mxu0 %v2278
    %2408 = vmatprep.subr.bf16.mxu0 %v2281
    %2409 = vmatpush1.bf16.msra.mxu0 %v2280
    %2410 = vmatprep.subr.bf16.mxu0 %v2283
    %2411 = vmatpush1.bf16.msra.mxu0 %v2282
    %2412 = vmatprep.subr.bf16.mxu0 %v2285
    %2413 = vmatpush1.bf16.msra.mxu0 %v2284
    %2414 = vmatprep.subr.bf16.mxu0 %v2287
    %2415 = vmatpush1.bf16.msra.mxu0 %v2286
    %2416 = vmatprep.subr.bf16.mxu0 %v2289
    %2417 = vmatpush1.bf16.msra.mxu0 %v2288
    %2418 = vmatprep.mubr.bf16.mxu0 %v1975
    %2419 = vmatmul.mubr.bf16.gmra.mrb[0].mxu0 %v1974
    %v2420 = vpop.f32.mrb[0].mxu0
    %v2421 = vadd.f32 %v2059, %v2420
    %v2422 = vpop.f32.mrb[0].mxu0
    %v2423 = vadd.f32 %v2063, %v2422
    %v2424 = vpop.f32.mrb[0].mxu0
    %v2425 = vadd.f32 %v2059, %v2424
    %v2426 = vpop.f32.mrb[0].mxu0
    %v2427 = vadd.f32 %v2063, %v2426
    %2428 = vmatprep.mubr.bf16.mxu0 %v1979
    %2429 = vmatmul.mubr.bf16.gmra.mrb[0].mxu0 %v1978
    %v2430 = vpop.f32.mrb[0].mxu0
    %v2431 = vadd.f32 %v2059, %v2430
    %v2432 = vpop.f32.mrb[0].mxu0
    %v2433 = vadd.f32 %v2063, %v2432
    %v2434 = vpop.f32.mrb[0].mxu0
    %v2435 = vadd.f32 %v2059, %v2434
    %v2436 = vpop.f32.mrb[0].mxu0
    %v2437 = vadd.f32 %v2063, %v2436
    %2438 = vmatprep.mubr.bf16.mxu0 %v1983
    %2439 = vmatmul.mubr.bf16.gmra.mrb[0].mxu0 %v1982
    %v2440 = vpop.f32.mrb[0].mxu0
    %v2441 = vadd.f32 %v2059, %v2440
    %v2442 = vpop.f32.mrb[0].mxu0
    %v2443 = vadd.f32 %v2063, %v2442
    %v2444 = vpop.f32.mrb[0].mxu0
    %v2445 = vadd.f32 %v2059, %v2444
    %v2446 = vpop.f32.mrb[0].mxu0
    %v2447 = vadd.f32 %v2063, %v2446
    %2448 = vmatprep.mubr.bf16.mxu0 %v1987
    %2449 = vmatmul.mubr.bf16.gmra.mrb[0].mxu0 %v1986
    %v2450 = vpop.f32.mrb[0].mxu0
    %v2451 = vadd.f32 %v2059, %v2450
    %v2452 = vpop.f32.mrb[0].mxu0
    %v2453 = vadd.f32 %v2063, %v2452
    %v2454 = vpop.f32.mrb[0].mxu0
    %v2455 = vadd.f32 %v2059, %v2454
    %v2456 = vpop.f32.mrb[0].mxu0
    %v2457 = vadd.f32 %v2063, %v2456
    %2458 = vdwg.mxu0
    %2459 = vmatprep.subr.bf16.mxu0 %v2291
    %2460 = vmatpush1.bf16.msra.mxu0 %v2290
    %2461 = vmatprep.subr.bf16.mxu0 %v2293
    %2462 = vmatpush1.bf16.msra.mxu0 %v2292
    %2463 = vmatprep.subr.bf16.mxu0 %v2295
    %2464 = vmatpush1.bf16.msra.mxu0 %v2294
    %2465 = vmatprep.subr.bf16.mxu0 %v2297
    %2466 = vmatpush1.bf16.msra.mxu0 %v2296
    %2467 = vmatprep.subr.bf16.mxu0 %v2299
    %2468 = vmatpush1.bf16.msra.mxu0 %v2298
    %2469 = vmatprep.subr.bf16.mxu0 %v2301
    %2470 = vmatpush1.bf16.msra.mxu0 %v2300
    %2471 = vmatprep.subr.bf16.mxu0 %v2303
    %2472 = vmatpush1.bf16.msra.mxu0 %v2302
    %2473 = vmatprep.subr.bf16.mxu0 %v2305
    %2474 = vmatpush1.bf16.msra.mxu0 %v2304
    %2475 = vmatprep.subr.bf16.mxu0 %v2307
    %2476 = vmatpush1.bf16.msra.mxu0 %v2306
    %2477 = vmatprep.subr.bf16.mxu0 %v2309
    %2478 = vmatpush1.bf16.msra.mxu0 %v2308
    %2479 = vmatprep.subr.bf16.mxu0 %v2311
    %2480 = vmatpush1.bf16.msra.mxu0 %v2310
    %2481 = vmatprep.subr.bf16.mxu0 %v2313
    %2482 = vmatpush1.bf16.msra.mxu0 %v2312
    %2483 = vmatprep.subr.bf16.mxu0 %v2315
    %2484 = vmatpush1.bf16.msra.mxu0 %v2314
    %2485 = vmatprep.subr.bf16.mxu0 %v2317
    %2486 = vmatpush1.bf16.msra.mxu0 %v2316
    %2487 = vmatprep.subr.bf16.mxu0 %v2319
    %2488 = vmatpush1.bf16.msra.mxu0 %v2318
    %2489 = vmatprep.subr.bf16.mxu0 %v2321
    %2490 = vmatpush1.bf16.msra.mxu0 %v2320
    %2491 = vmatprep.mubr.bf16.mxu0 %v1977
    %2492 = vmatmul.mubr.bf16.gmra.mrb[0].mxu0 %v1976
    %v2493 = vpop.f32.mrb[0].mxu0
    %v2494 = vadd.f32 %v2421, %v2493
    %v2495 = vpop.f32.mrb[0].mxu0
    %v2496 = vadd.f32 %v2423, %v2495
    %v2497 = vpop.f32.mrb[0].mxu0
    %v2498 = vadd.f32 %v2425, %v2497
    %v2499 = vpop.f32.mrb[0].mxu0
    %v2500 = vadd.f32 %v2427, %v2499
    %2501 = vmatprep.mubr.bf16.mxu0 %v1981
    %2502 = vmatmul.mubr.bf16.gmra.mrb[0].mxu0 %v1980
    %v2503 = vpop.f32.mrb[0].mxu0
    %v2504 = vadd.f32 %v2431, %v2503
    %v2505 = vpop.f32.mrb[0].mxu0
    %v2506 = vadd.f32 %v2433, %v2505
    %v2507 = vpop.f32.mrb[0].mxu0
    %v2508 = vadd.f32 %v2435, %v2507
    %v2509 = vpop.f32.mrb[0].mxu0
    %v2510 = vadd.f32 %v2437, %v2509
    %2511 = vmatprep.mubr.bf16.mxu0 %v1985
    %2512 = vmatmul.mubr.bf16.gmra.mrb[0].mxu0 %v1984
    %v2513 = vpop.f32.mrb[0].mxu0
    %v2514 = vadd.f32 %v2441, %v2513
    %v2515 = vpop.f32.mrb[0].mxu0
    %v2516 = vadd.f32 %v2443, %v2515
    %v2517 = vpop.f32.mrb[0].mxu0
    %v2518 = vadd.f32 %v2445, %v2517
    %v2519 = vpop.f32.mrb[0].mxu0
    %v2520 = vadd.f32 %v2447, %v2519
    %2521 = vmatprep.mubr.bf16.mxu0 %v1989
    %2522 = vmatmul.mubr.bf16.gmra.mrb[0].mxu0 %v1988
    %v2523 = vpop.f32.mrb[0].mxu0
    %v2524 = vadd.f32 %v2451, %v2523
    %v2525 = vpop.f32.mrb[0].mxu0
    %v2526 = vadd.f32 %v2453, %v2525
    %v2527 = vpop.f32.mrb[0].mxu0
    %v2528 = vadd.f32 %v2455, %v2527
    %v2529 = vpop.f32.mrb[0].mxu0
    %v2530 = vadd.f32 %v2457, %v2529
    %2531 = vdwg.mxu0
    %v2532 = vtanh.pop %v2494
    %v2533 = vtanh.pop %v2496
    %v2534 = vtanh.pop %v2498
    %v2535 = vtanh.pop %v2500
    %v2536 = vtanh.pop %v2504
    %v2537 = vtanh.pop %v2506
    %v2538 = vtanh.pop %v2508
    %v2539 = vtanh.pop %v2510
    %v2540 = vtanh.pop %v2514
    %v2541 = vtanh.pop %v2516
    %v2542 = vtanh.pop %v2518
    %v2543 = vtanh.pop %v2520
    %v2544 = vtanh.pop %v2524
    %v2545 = vtanh.pop %v2526
    %v2546 = vtanh.pop %v2528
    %v2547 = vtanh.pop %v2530
    %2548 = vst [vmem:[#allocation16] sm:$0xff] %v2532
    %2549 = vst [vmem:[#allocation16 + $0x8] sm:$0xff] %v2533
    %2550 = vst [vmem:[#allocation16 + $0x10] sm:$0xff] %v2534
    %2551 = vst [vmem:[#allocation16 + $0x18] sm:$0xff] %v2535
    %2552 = vst [vmem:[#allocation16 + $0x20] sm:$0xff] %v2536
    %2553 = vst [vmem:[#allocation16 + $0x28] sm:$0xff] %v2537
    %2554 = vst [vmem:[#allocation16 + $0x30] sm:$0xff] %v2538
    %2555 = vst [vmem:[#allocation16 + $0x38] sm:$0xff] %v2539
    %2556 = vst [vmem:[#allocation16 + $0x40] sm:$0xff] %v2540
    %2557 = vst [vmem:[#allocation16 + $0x48] sm:$0xff] %v2541
    %2558 = vst [vmem:[#allocation16 + $0x50] sm:$0xff] %v2542
    %2559 = vst [vmem:[#allocation16 + $0x58] sm:$0xff] %v2543
    %2560 = vst [vmem:[#allocation16 + $0x60] sm:$0xff] %v2544
    %2561 = vst [vmem:[#allocation16 + $0x68] sm:$0xff] %v2545
    %2562 = vst [vmem:[#allocation16 + $0x70] sm:$0xff] %v2546
    %2563 = vst [vmem:[#allocation16 + $0x78] sm:$0xff] %v2547
    // Predicated region
    $region66: #{decoder_forward.1} parent=1 // pred_check
      _
    $region67: #{decoder_forward.1} parent=1 // pred_check_branch
      %2565 = sbr.rel (0) target = $region69
    $region68: #{decoder_forward.1} parent=1 // pred_region
      %s2567 = ssub.s32 2048, 2048
      %2568 = vsyncadd [#allocation4], %s2567
      %s2569 = sshll.u32 [#allocation16], 4
      %s2570 = int_to_ptr.vmem [resolvable:$true] %s2569
      %2575 = dma.vmem_to_hbm [thread:$0]  %s2570, 2048, %s8, [#allocation4], 256, 256, 16
    $region69: #{decoder_forward.1} parent=1 // pred_fallthru
      _
    // Predicated region
    $region70: #{decoder_forward.1} parent=1 // pred_check
      _
    $region71: #{decoder_forward.1} parent=1 // pred_check_branch
      %2577 = sbr.rel (0) target = $region73
    $region72: #{decoder_forward.1} parent=1 // pred_region
      %2578 = dma.done [#allocation4], 2048
    $region73: #{decoder_forward.1} parent=1 // pred_fallthru
      _
    %2579 = vsyncpa [#allocation3], 1
    %2580 = vsyncpa [#allocation6], 1
    %2581 = vsyncpa [#allocation9], 1
    %2582 = vsyncpa [#allocation12], 1
    %2583 = vsyncpa [#allocation15], 1
    %2584 = vsyncpa [#allocation4], 1

</llo_original>
